<compile_context>
chip_gen: v6e
topology: v6e:2x2x1
jax: 0.10.0
libtpu: 0.0.40
codegen_flags: <defaults>
</compile_context>

<pallas_src>
import jax
import jax.numpy as jnp
from jax.experimental import pallas as pl
from jax.experimental.pallas import tpu as pltpu


# ---------------------------------------------------------------------------
# small helpers
# ---------------------------------------------------------------------------
def _round_up(x, m):
    return ((x + m - 1) // m) * m


def _pick_tile_m(mp, k=0, cp=0):
    """Largest lane tile dividing mp whose blocks stay comfortably inside VMEM."""
    budget = 4 * 1024 * 1024  # per-block bytes (Pallas double-buffers on top)
    for t in (2048, 1024, 512, 256, 128):
        if mp % t != 0:
            continue
        if k * t * 2 + cp * t * 4 <= budget or t == 128:
            return t
    return 128


def _pick_row_block(n):
    for r in (1024, 512, 256, 128, 64, 32, 16, 8):
        if n % r == 0:
            return r
    return n


# ---------------------------------------------------------------------------
# Pallas kernels
# ---------------------------------------------------------------------------
def _matmul_stats_kernel(w_ref, a_ref, y_ref, s_ref, q_ref):
    """y = W @ A for one (parity, M-tile); also accumulates per-channel sum / sumsq."""
    y = jnp.dot(w_ref[0], a_ref[0], preferred_element_type=jnp.float32)  # (Cp, tm)
    y_ref[0] = y

    @pl.when(pl.program_id(1) == 0)
    def _init():
        s_ref[...] = jnp.zeros_like(s_ref)
        q_ref[...] = jnp.zeros_like(q_ref)

    s_ref[...] += jnp.sum(y, axis=1, keepdims=True)[None]
    q_ref[...] += jnp.sum(y * y, axis=1, keepdims=True)[None]


def _make_matmul_act_kernel(act):
    def kern(w_ref, a_ref, y_ref):
        y = jnp.dot(w_ref[0], a_ref[0], preferred_element_type=jnp.float32)
        if act == "sigmoid":
            y = 1.0 / (1.0 + jnp.exp(-y))       # EUP exp + VPU recip
        elif act == "tanh":
            y = jnp.tanh(y)
        y_ref[0] = y
    return kern


def _bn_relu_apply_kernel(x_ref, sc_ref, sh_ref, o_ref):
    y = jnp.maximum(x_ref[0] * sc_ref[...] + sh_ref[...], 0.0)
    o_ref[0] = y.astype(o_ref.dtype)


# ---------------------------------------------------------------------------
# pallas_call wrappers
# ---------------------------------------------------------------------------
def parity_matmul_stats(w_all, a_all):
    """w_all: (P, Cp, K) bf16, a_all: (PA, K, Mp) bf16 with PA in {P, 1}.
    Returns y (P, Cp, Mp) f32 and per-parity channel sums / sum-of-squares."""
    P, Cp, K = w_all.shape
    PA, K2, Mp = a_all.shape
    assert K == K2
    tm = _pick_tile_m(Mp, K, Cp)
    a_map = (lambda p, j: (p, 0, j)) if PA == P else (lambda p, j: (0, 0, j))
    return pl.pallas_call(
        _matmul_stats_kernel,
        out_shape=(jax.ShapeDtypeStruct((P, Cp, Mp), jnp.float32),
                   jax.ShapeDtypeStruct((P, Cp, 1), jnp.float32),
                   jax.ShapeDtypeStruct((P, Cp, 1), jnp.float32)),
        grid=(P, Mp // tm),
        in_specs=[pl.BlockSpec((1, Cp, K), lambda p, j: (p, 0, 0)),
                  pl.BlockSpec((1, K, tm), a_map)],
        out_specs=(pl.BlockSpec((1, Cp, tm), lambda p, j: (p, 0, j)),
                   pl.BlockSpec((1, Cp, 1), lambda p, j: (p, 0, 0)),
                   pl.BlockSpec((1, Cp, 1), lambda p, j: (p, 0, 0))),
        compiler_params=pltpu.CompilerParams(
            dimension_semantics=("parallel", "arbitrary")),
    )(w_all, a_all)


def parity_matmul_act(w_all, a_all, act="none"):
    """Matmul with the output activation fused into the epilogue (no stats)."""
    P, Cp, K = w_all.shape
    PA, K2, Mp = a_all.shape
    assert K == K2
    tm = _pick_tile_m(Mp, K, Cp)
    a_map = (lambda p, j: (p, 0, j)) if PA == P else (lambda p, j: (0, 0, j))
    return pl.pallas_call(
        _make_matmul_act_kernel(act),
        out_shape=jax.ShapeDtypeStruct((P, Cp, Mp), jnp.float32),
        grid=(P, Mp // tm),
        in_specs=[pl.BlockSpec((1, Cp, K), lambda p, j: (p, 0, 0)),
                  pl.BlockSpec((1, K, tm), a_map)],
        out_specs=pl.BlockSpec((1, Cp, tm), lambda p, j: (p, 0, j)),
        compiler_params=pltpu.CompilerParams(
            dimension_semantics=("parallel", "parallel")),
    )(w_all, a_all)


def bn_relu_apply(y, scale, shift):
    """Elementwise y*scale+shift, ReLU; lane-dense bf16 output."""
    P, Cp, Mp = y.shape
    tm = _pick_tile_m(Mp, 0, Cp + 2)
    return pl.pallas_call(
        _bn_relu_apply_kernel,
        out_shape=jax.ShapeDtypeStruct((P, Cp, Mp), jnp.bfloat16),
        grid=(P, Mp // tm),
        in_specs=[pl.BlockSpec((1, Cp, tm), lambda p, j: (p, 0, j)),
                  pl.BlockSpec((Cp, 1), lambda p, j: (0, 0)),
                  pl.BlockSpec((Cp, 1), lambda p, j: (0, 0))],
        out_specs=pl.BlockSpec((1, Cp, tm), lambda p, j: (p, 0, j)),
        compiler_params=pltpu.CompilerParams(
            dimension_semantics=("parallel", "parallel")),
    )(y, scale.reshape(Cp, 1).astype(jnp.float32),
      shift.reshape(Cp, 1).astype(jnp.float32))


# ---------------------------------------------------------------------------
# glue: parity im2col, weight prep, BN finish + parity interleave
# ---------------------------------------------------------------------------
# For ConvTranspose3d(k=4, s=2, p=1), output index od = 2*q + parity:
#   parity 0: input taps at padded offsets (0, 1) with kernel indices (3, 1)
#   parity 1: input taps at padded offsets (1, 2) with kernel indices (2, 0)
_PARITY_OFFS = ((0, 1), (1, 2))
_PARITY_KIDX = ((3, 1), (2, 0))


def _im2col_parity(x_cm):
    """x_cm: (C, B, D, H, W) -> A: (8, C*8, Mpad) bf16 with M = B*D*H*W."""
    C, B, D, H, W = x_cm.shape
    xp = jnp.pad(x_cm, ((0, 0), (0, 0), (1, 1), (1, 1), (1, 1)))
    M = B * D * H * W
    Mp = _round_up(M, 128)
    mats = []
    for pd in range(2):
        for ph in range(2):
            for pw in range(2):
                taps = []
                for td in range(2):
                    for th in range(2):
                        for tw in range(2):
                            d0 = _PARITY_OFFS[pd][td]
                            h0 = _PARITY_OFFS[ph][th]
                            w0 = _PARITY_OFFS[pw][tw]
                            taps.append(xp[:, :, d0:d0 + D, h0:h0 + H, w0:w0 + W])
                t = jnp.stack(taps, axis=1).reshape(C * 8, M)
                mats.append(t)
    a = jnp.stack(mats, axis=0)                                  # (8, C*8, M)
    if Mp > M:
        a = jnp.pad(a, ((0, 0), (0, 0), (0, Mp - M)))            # zero cols: no stat leak
    return a.astype(jnp.bfloat16), M


def _prep_convT_weight(w):
    """w: (Cin, Cout, 4,4,4) f32 -> (8, Cout_pad8, Cin*8) bf16 (per-parity 2x2x2 taps)."""
    Cin, Cout = w.shape[0], w.shape[1]
    Cp = _round_up(Cout, 8)
    mats = []
    for pd in range(2):
        for ph in range(2):
            for pw in range(2):
                sub = jnp.take(w, jnp.array(_PARITY_KIDX[pd]), axis=2)
                sub = jnp.take(sub, jnp.array(_PARITY_KIDX[ph]), axis=3)
                sub = jnp.take(sub, jnp.array(_PARITY_KIDX[pw]), axis=4)
                m = sub.transpose(1, 0, 2, 3, 4).reshape(Cout, Cin * 8)
                mats.append(m)
    w_all = jnp.stack(mats, axis=0)                              # (8, Cout, Cin*8)
    if Cp > Cout:
        w_all = jnp.pad(w_all, ((0, 0), (0, Cp - Cout), (0, 0)))
    return w_all.astype(jnp.bfloat16)


def _prep_fused_lin_conv1(lin_w, lin_b, w1):
    """Fuse Linear + first ConvTranspose3d for in_dim == 1 (only the central 2x2x2
    taps contribute). Returns (8, C1_pad8, round_up(noise_dim+1,8)) bf16 and K."""
    nd = lin_w.shape[0]
    C1 = w1.shape[1]
    Cp = _round_up(C1, 8)
    KP = _round_up(nd + 1, 8)
    kidx1 = (1, 2)      # parity bit -> the single contributing kernel index
    mats = []
    for pd in range(2):
        for ph in range(2):
            for pw in range(2):
                wp = w1[:, :, kidx1[pd], kidx1[ph], kidx1[pw]].T    # (C1, Cin)
                wf = wp @ lin_w.T                                   # (C1, nd)
                bf = wp @ lin_b                                     # (C1,)
                m = jnp.zeros((Cp, KP), jnp.float32)
                m = m.at[:C1, :nd].set(wf).at[:C1, nd].set(bf)
                mats.append(m)
    return jnp.stack(mats, axis=0).astype(jnp.bfloat16), KP


def _bn_relu_assemble(y, s, q, gamma, beta, B, D, H, W):
    """Training-mode BatchNorm3d + ReLU from accumulated stats, then interleave the
    8 parities into channel-major (C, B, 2D, 2H, 2W) bf16."""
    P, Cp, Mp = y.shape
    Cout = gamma.shape[0]
    M = B * D * H * W
    count = 8.0 * M                                   # real elements per channel
    tot = jnp.sum(s[:, :, 0], axis=0)                 # (Cp,)
    tot2 = jnp.sum(q[:, :, 0], axis=0)
    mean = tot / count
    var = jnp.maximum(tot2 / count - mean * mean, 0.0)   # biased var (train mode)
    g = jnp.pad(gamma, (0, Cp - Cout))
    b = jnp.pad(beta, (0, Cp - Cout))
    scale = g * jax.lax.rsqrt(var + 1e-5)
    shift = b - mean * scale
    yb = bn_relu_apply(y, scale, shift)               # (8, Cp, Mp) bf16
    yb = yb[:, :Cout, :M].reshape(2, 2, 2, Cout, B, D, H, W)
    out = yb.transpose(3, 4, 5, 0, 6, 1, 7, 2)        # (C, B, D, pd, H, ph, W, pw)
    return out.reshape(Cout, B, 2 * D, 2 * H, 2 * W)


def _conv_bn_relu_block(x_cm, w_all, gamma, beta):
    _, B, D, H, W = x_cm.shape
    a, _ = _im2col_parity(x_cm)
    y, s, q = parity_matmul_stats(w_all, a)
    return _bn_relu_assemble(y, s, q, gamma, beta, B, D, H, W)


def _conv_final_block(x_cm, w_all, out_channels, act):
    _, B, D, H, W = x_cm.shape
    a, M = _im2col_parity(x_cm)
    y = parity_matmul_act(w_all, a, act)              # (8, Cp, Mp) f32, act fused
    y = y[:, :out_channels, :M].reshape(2, 2, 2, out_channels, B, D, H, W)
    out = y.transpose(4, 3, 5, 0, 6, 1, 7, 2)         # (B, C, D, pd, H, ph, W, pw)
    return out.reshape(B, out_channels, 2 * D, 2 * H, 2 * W)


# ---------------------------------------------------------------------------
# Generator
# ---------------------------------------------------------------------------
class GeneratorPallas:
    def __init__(self, in_channels=512, out_dim=64, out_channels=1, noise_dim=200,
                 activation="sigmoid", key=None):
        self.in_channels = in_channels
        self.out_dim = out_dim
        self.in_dim = int(out_dim / 16)
        self.noise_dim = noise_dim
        self.out_channels = out_channels
        self.activation = activation

        c1 = int(in_channels / 2.0)
        c2 = int(c1 / 2)
        c3 = int(c2 / 2)

        key = jax.random.PRNGKey(0) if key is None else key
        ks = jax.random.split(key, 6)
        lin_out = in_channels * self.in_dim ** 3
        self.lin_out = lin_out
        # deterministic synthetic params (not a checkpoint load)
        lin_w = 0.02 * jax.random.normal(ks[0], (noise_dim, lin_out), jnp.float32)
        lin_b = 0.01 * jax.random.normal(ks[1], (lin_out,), jnp.float32)
        w1 = 0.02 * jax.random.normal(ks[2], (in_channels, c1, 4, 4, 4), jnp.float32)
        w2 = 0.02 * jax.random.normal(ks[3], (c1, c2, 4, 4, 4), jnp.float32)
        w3 = 0.02 * jax.random.normal(ks[4], (c2, c3, 4, 4, 4), jnp.float32)
        w4 = 0.02 * jax.random.normal(ks[5], (c3, out_channels, 4, 4, 4), jnp.float32)
        self.g1, self.b1 = jnp.ones((c1,), jnp.float32), jnp.zeros((c1,), jnp.float32)
        self.g2, self.b2 = jnp.ones((c2,), jnp.float32), jnp.zeros((c2,), jnp.float32)
        self.g3, self.b3 = jnp.ones((c3,), jnp.float32), jnp.zeros((c3,), jnp.float32)

        # ---- one-time weight prep (flip / parity reorder / pad / bf16 cast) ----
        if self.in_dim == 1:
            # Linear + conv1 collapse into one per-parity matmul.
            self.w1_fused, self.kp1 = _prep_fused_lin_conv1(lin_w, lin_b, w1)
        else:
            kp = _round_up(noise_dim + 1, 8)
            self.kp_lin = kp
            w_lin = jnp.zeros((lin_out, kp), jnp.float32)
            w_lin = w_lin.at[:, :noise_dim].set(lin_w.T).at[:, noise_dim].set(lin_b)
            rb = _pick_row_block(lin_out)
            self.w_lin_blocks = w_lin.reshape(lin_out // rb, rb, kp).astype(jnp.bfloat16)
            self.w1_all = _prep_convT_weight(w1)
        self.w2_all = _prep_convT_weight(w2)
        self.w3_all = _prep_convT_weight(w3)
        self.w4_all = _prep_convT_weight(w4)

        self._fwd = jax.jit(self._forward)

    # TODO(synk): BatchNorm running-mean/var buffers are not tracked (forward uses
    # training-mode batch statistics, matching the default .train() behaviour).
    def _forward(self, z):
        B = z.shape[0]
        Mp0 = _round_up(B, 128)
        if self.in_dim == 1:
            # fused Linear + conv1 (per parity), then BN+ReLU
            a = jnp.zeros((self.kp1, Mp0), jnp.float32)
            a = a.at[:self.noise_dim, :B].set(z.astype(jnp.float32).T)
            a = a.at[self.noise_dim, :B].set(1.0)
            a = a.astype(jnp.bfloat16)[None]                      # (1, KP, Mp)
            y, s, q = parity_matmul_stats(self.w1_fused, a)
            h = _bn_relu_assemble(y, s, q, self.g1, self.b1, B, 1, 1, 1)
        else:
            # Linear (bias folded via augmented column), channel-major project
            a = jnp.zeros((self.kp_lin, Mp0), jnp.float32)
            a = a.at[:self.noise_dim, :B].set(z.astype(jnp.float32).T)
            a = a.at[self.noise_dim, :B].set(1.0)
            a = a.astype(jnp.bfloat16)[None]                      # (1, KP, Mp)
            ht = parity_matmul_act(self.w_lin_blocks, a, act="none")
            ht = ht.reshape(self.lin_out, Mp0)[:, :B]             # (Cin*d^3, B)
            h = ht.reshape(self.in_channels, self.in_dim, self.in_dim, self.in_dim, B)
            h = h.transpose(0, 4, 1, 2, 3).astype(jnp.bfloat16)   # (Cin, B, d, d, d)
            h = _conv_bn_relu_block(h, self.w1_all, self.g1, self.b1)

        h = _conv_bn_relu_block(h, self.w2_all, self.g2, self.b2)
        h = _conv_bn_relu_block(h, self.w3_all, self.g3, self.b3)
        # final ConvTranspose3d with sigmoid/tanh fused into the matmul epilogue
        return _conv_final_block(h, self.w4_all, self.out_channels, self.activation)

    def __call__(self, z):
        return self._fwd(z)


# ---------------------------------------------------------------------------
if __name__ == "__main__":
    key = jax.random.PRNGKey(0)
    # small config consistent with the module: out_dim=16 -> starting volume 1^3,
    # channels 32 -> 16 -> 8 -> 4 -> 1, spatial 1 -> 2 -> 4 -> 8 -> 16
    gen = GeneratorPallas(in_channels=32, out_dim=16, out_channels=1, noise_dim=16,
                          activation="sigmoid", key=key)
    z = jax.random.normal(jax.random.fold_in(key, 123), (2, 16), jnp.float32)
    out = gen(z)
    out = jax.block_until_ready(out)
    assert out.shape == (2, 1, 16, 16, 16), out.shape
    assert bool(jnp.all(jnp.isfinite(out)))
    assert bool(jnp.all((out >= 0.0) & (out <= 1.0)))   # sigmoid range
    print("KERNEL_OK")
</pallas_src>

<mosaic_0001>
module attributes {stable_mosaic.version = 11 : i64} {
  func.func @_matmul_stats_kernel(%arg0: i32, %arg1: i32, %arg2: memref<1x16x24xbf16, #tpu.memory_space<vmem>>, %arg3: memref<1x24x128xbf16, #tpu.memory_space<vmem>>, %arg4: memref<1x16x128xf32, #tpu.memory_space<vmem>>, %arg5: memref<1x16x1xf32, #tpu.memory_space<vmem>>, %arg6: memref<1x16x1xf32, #tpu.memory_space<vmem>>) attributes {dimension_semantics = [#tpu.dimension_semantics<parallel>, #tpu.dimension_semantics<arbitrary>], iteration_bounds = array<i64: 8, 1>, scalar_prefetch = 0 : i64, scratch_operands = 0 : i64, tpu.core_type = #tpu.core_type<tc>, window_params = [{transform_indices = @transform_0, window_bounds = array<i64: 1, 16, 24>}, {transform_indices = @transform_1, window_bounds = array<i64: 1, 24, 128>}, {transform_indices = @transform_2, window_bounds = array<i64: 1, 16, 128>}, {transform_indices = @transform_3, window_bounds = array<i64: 1, 16, 1>}, {transform_indices = @transform_4, window_bounds = array<i64: 1, 16, 1>}]} {
    %c0 = arith.constant 0 : index
    %c0_0 = arith.constant 0 : index
    %c0_1 = arith.constant 0 : index
    %0 = vector.load %arg2[%c0, %c0_0, %c0_1] : memref<1x16x24xbf16, #tpu.memory_space<vmem>>, vector<1x16x24xbf16>
    %1 = vector.shape_cast %0 : vector<1x16x24xbf16> to vector<16x24xbf16>
    %c0_2 = arith.constant 0 : index
    %c0_3 = arith.constant 0 : index
    %c0_4 = arith.constant 0 : index
    %2 = vector.load %arg3[%c0_2, %c0_3, %c0_4] : memref<1x24x128xbf16, #tpu.memory_space<vmem>>, vector<1x24x128xbf16>
    %3 = vector.shape_cast %2 : vector<1x24x128xbf16> to vector<24x128xbf16>
    %cst = arith.constant dense<0.000000e+00> : vector<16x128xf32>
    %4 = tpu.matmul %1, %3, %cst {dimension_numbers = #tpu.dot_dimension_numbers<[1], [0], [0], [1], [0, 0, 1, 1], [], []>} : vector<16x24xbf16>, vector<24x128xbf16>, vector<16x128xf32> -> vector<16x128xf32>
    %c0_5 = arith.constant 0 : index
    %c0_6 = arith.constant 0 : index
    %c0_7 = arith.constant 0 : index
    %5 = vector.load %arg4[%c0_5, %c0_6, %c0_7] : memref<1x16x128xf32, #tpu.memory_space<vmem>>, vector<1x16x128xf32>
    %6 = vector.shape_cast %5 : vector<1x16x128xf32> to vector<16x128xf32>
    %7 = vector.shape_cast %4 : vector<16x128xf32> to vector<1x16x128xf32>
    tpu.vector_store %arg4[%c0_5, %c0_6, %c0_7], %7 {strides = array<i32>} : memref<1x16x128xf32, #tpu.memory_space<vmem>>, vector<1x16x128xf32>,
    %c0_i32 = arith.constant 0 : i32
    %8 = arith.cmpi eq, %arg1, %c0_i32 : i32
    %9 = arith.extui %8 : i1 to i32
    %c0_i32_8 = arith.constant 0 : i32
    %10 = arith.cmpi ne, %9, %c0_i32_8 : i32
    scf.if %10 {
      %cst_23 = arith.constant 0.000000e+00 : f32
      %24 = vector.broadcast %cst_23 : f32 to vector<1x16x1xf32>
      %c0_24 = arith.constant 0 : index
      %c0_25 = arith.constant 0 : index
      %c0_26 = arith.constant 0 : index
      %25 = vector.load %arg5[%c0_24, %c0_25, %c0_26] : memref<1x16x1xf32, #tpu.memory_space<vmem>>, vector<1x16x1xf32>
      tpu.vector_store %arg5[%c0_24, %c0_25, %c0_26], %24 {strides = array<i32>} : memref<1x16x1xf32, #tpu.memory_space<vmem>>, vector<1x16x1xf32>,
      %cst_27 = arith.constant 0.000000e+00 : f32
      %26 = vector.broadcast %cst_27 : f32 to vector<1x16x1xf32>
      %c0_28 = arith.constant 0 : index
      %c0_29 = arith.constant 0 : index
      %c0_30 = arith.constant 0 : index
      %27 = vector.load %arg6[%c0_28, %c0_29, %c0_30] : memref<1x16x1xf32, #tpu.memory_space<vmem>>, vector<1x16x1xf32>
      tpu.vector_store %arg6[%c0_28, %c0_29, %c0_30], %26 {strides = array<i32>} : memref<1x16x1xf32, #tpu.memory_space<vmem>>, vector<1x16x1xf32>,
    } else {
    }
    %c0_9 = arith.constant 0 : index
    %c0_10 = arith.constant 0 : index
    %c0_11 = arith.constant 0 : index
    %11 = vector.load %arg5[%c0_9, %c0_10, %c0_11] : memref<1x16x1xf32, #tpu.memory_space<vmem>>, vector<1x16x1xf32>
    %cst_12 = arith.constant dense<0.000000e+00> : vector<16xf32>
    %12 = vector.multi_reduction <add>, %4, %cst_12 [1] : vector<16x128xf32> to vector<16xf32>
    %13 = vector.shape_cast %12 : vector<16xf32> to vector<16x1xf32>
    %14 = vector.shape_cast %13 : vector<16x1xf32> to vector<1x16x1xf32>
    %15 = arith.addf %11, %14 : vector<1x16x1xf32>
    %c0_13 = arith.constant 0 : index
    %c0_14 = arith.constant 0 : index
    %c0_15 = arith.constant 0 : index
    %16 = vector.load %arg5[%c0_13, %c0_14, %c0_15] : memref<1x16x1xf32, #tpu.memory_space<vmem>>, vector<1x16x1xf32>
    tpu.vector_store %arg5[%c0_13, %c0_14, %c0_15], %15 {strides = array<i32>} : memref<1x16x1xf32, #tpu.memory_space<vmem>>, vector<1x16x1xf32>,
    %c0_16 = arith.constant 0 : index
    %c0_17 = arith.constant 0 : index
    %c0_18 = arith.constant 0 : index
    %17 = vector.load %arg6[%c0_16, %c0_17, %c0_18] : memref<1x16x1xf32, #tpu.memory_space<vmem>>, vector<1x16x1xf32>
    %18 = arith.mulf %4, %4 : vector<16x128xf32>
    %cst_19 = arith.constant dense<0.000000e+00> : vector<16xf32>
    %19 = vector.multi_reduction <add>, %18, %cst_19 [1] : vector<16x128xf32> to vector<16xf32>
    %20 = vector.shape_cast %19 : vector<16xf32> to vector<16x1xf32>
    %21 = vector.shape_cast %20 : vector<16x1xf32> to vector<1x16x1xf32>
    %22 = arith.addf %17, %21 : vector<1x16x1xf32>
    %c0_20 = arith.constant 0 : index
    %c0_21 = arith.constant 0 : index
    %c0_22 = arith.constant 0 : index
    %23 = vector.load %arg6[%c0_20, %c0_21, %c0_22] : memref<1x16x1xf32, #tpu.memory_space<vmem>>, vector<1x16x1xf32>
    tpu.vector_store %arg6[%c0_20, %c0_21, %c0_22], %22 {strides = array<i32>} : memref<1x16x1xf32, #tpu.memory_space<vmem>>, vector<1x16x1xf32>,
    return
  }
  func.func @transform_0(%arg0: i32, %arg1: i32) -> (i32, i32, i32) {
    %c0_i32 = arith.constant 0 : i32
    %c0_i32_0 = arith.constant 0 : i32
    %c0_i32_1 = arith.constant 0 : i32
    return %arg0, %c0_i32, %c0_i32_0 : i32, i32, i32
  }
  func.func @transform_1(%arg0: i32, %arg1: i32) -> (i32, i32, i32) {
    %c0_i32 = arith.constant 0 : i32
    %c0_i32_0 = arith.constant 0 : i32
    %c0_i32_1 = arith.constant 0 : i32
    return %c0_i32, %c0_i32_0, %arg1 : i32, i32, i32
  }
  func.func @transform_2(%arg0: i32, %arg1: i32) -> (i32, i32, i32) {
    %c0_i32 = arith.constant 0 : i32
    %c0_i32_0 = arith.constant 0 : i32
    return %arg0, %c0_i32, %arg1 : i32, i32, i32
  }
  func.func @transform_3(%arg0: i32, %arg1: i32) -> (i32, i32, i32) {
    %c0_i32 = arith.constant 0 : i32
    %c0_i32_0 = arith.constant 0 : i32
    %c0_i32_1 = arith.constant 0 : i32
    return %arg0, %c0_i32, %c0_i32_0 : i32, i32, i32
  }
  func.func @transform_4(%arg0: i32, %arg1: i32) -> (i32, i32, i32) {
    %c0_i32 = arith.constant 0 : i32
    %c0_i32_0 = arith.constant 0 : i32
    %c0_i32_1 = arith.constant 0 : i32
    return %arg0, %c0_i32, %c0_i32_0 : i32, i32, i32
  }
}

module attributes {stable_mosaic.version = 11 : i64} {
  func.func @_bn_relu_apply_kernel(%arg0: i32, %arg1: i32, %arg2: memref<1x16x128xf32, #tpu.memory_space<vmem>>, %arg3: memref<16x1xf32, #tpu.memory_space<vmem>>, %arg4: memref<16x1xf32, #tpu.memory_space<vmem>>, %arg5: memref<1x16x128xbf16, #tpu.memory_space<vmem>>) attributes {dimension_semantics = [#tpu.dimension_semantics<parallel>, #tpu.dimension_semantics<parallel>], iteration_bounds = array<i64: 8, 1>, scalar_prefetch = 0 : i64, scratch_operands = 0 : i64, tpu.core_type = #tpu.core_type<tc>, window_params = [{transform_indices = @transform_0, window_bounds = array<i64: 1, 16, 128>}, {pipeline_mode = #tpu.pipeline_mode<synchronous>, transform_indices = @transform_1, window_bounds = array<i64: 16, 1>}, {pipeline_mode = #tpu.pipeline_mode<synchronous>, transform_indices = @transform_2, window_bounds = array<i64: 16, 1>}, {transform_indices = @transform_3, window_bounds = array<i64: 1, 16, 128>}]} {
    %c0 = arith.constant 0 : index
    %c0_0 = arith.constant 0 : index
    %c0_1 = arith.constant 0 : index
    %0 = vector.load %arg2[%c0, %c0_0, %c0_1] : memref<1x16x128xf32, #tpu.memory_space<vmem>>, vector<1x16x128xf32>
    %1 = vector.shape_cast %0 : vector<1x16x128xf32> to vector<16x128xf32>
    %c0_2 = arith.constant 0 : index
    %c0_3 = arith.constant 0 : index
    %2 = vector.load %arg3[%c0_2, %c0_3] : memref<16x1xf32, #tpu.memory_space<vmem>>, vector<16x1xf32>
    %3 = vector.broadcast %2 : vector<16x1xf32> to vector<16x128xf32>
    %4 = arith.mulf %1, %3 : vector<16x128xf32>
    %c0_4 = arith.constant 0 : index
    %c0_5 = arith.constant 0 : index
    %5 = vector.load %arg4[%c0_4, %c0_5] : memref<16x1xf32, #tpu.memory_space<vmem>>, vector<16x1xf32>
    %6 = vector.broadcast %5 : vector<16x1xf32> to vector<16x128xf32>
    %7 = arith.addf %4, %6 : vector<16x128xf32>
    %cst = arith.constant 0.000000e+00 : f32
    %8 = vector.broadcast %cst : f32 to vector<16x128xf32>
    %9 = arith.maximumf %7, %8 : vector<16x128xf32>
    %10 = arith.truncf %9 : vector<16x128xf32> to vector<16x128xbf16>
    %c0_6 = arith.constant 0 : index
    %c0_7 = arith.constant 0 : index
    %c0_8 = arith.constant 0 : index
    %11 = vector.load %arg5[%c0_6, %c0_7, %c0_8] : memref<1x16x128xbf16, #tpu.memory_space<vmem>>, vector<1x16x128xbf16>
    %12 = vector.shape_cast %11 : vector<1x16x128xbf16> to vector<16x128xbf16>
    %13 = vector.shape_cast %10 : vector<16x128xbf16> to vector<1x16x128xbf16>
    tpu.vector_store %arg5[%c0_6, %c0_7, %c0_8], %13 {strides = array<i32>} : memref<1x16x128xbf16, #tpu.memory_space<vmem>>, vector<1x16x128xbf16>,
    return
  }
  func.func @transform_0(%arg0: i32, %arg1: i32) -> (i32, i32, i32) {
    %c0_i32 = arith.constant 0 : i32
    %c0_i32_0 = arith.constant 0 : i32
    return %arg0, %c0_i32, %arg1 : i32, i32, i32
  }
  func.func @transform_1(%arg0: i32, %arg1: i32) -> (i32, i32) {
    %c0_i32 = arith.constant 0 : i32
    %c0_i32_0 = arith.constant 0 : i32
    %c0_i32_1 = arith.constant 0 : i32
    return %c0_i32, %c0_i32_0 : i32, i32
  }
  func.func @transform_2(%arg0: i32, %arg1: i32) -> (i32, i32) {
    %c0_i32 = arith.constant 0 : i32
    %c0_i32_0 = arith.constant 0 : i32
    %c0_i32_1 = arith.constant 0 : i32
    return %c0_i32, %c0_i32_0 : i32, i32
  }
  func.func @transform_3(%arg0: i32, %arg1: i32) -> (i32, i32, i32) {
    %c0_i32 = arith.constant 0 : i32
    %c0_i32_0 = arith.constant 0 : i32
    return %arg0, %c0_i32, %arg1 : i32, i32, i32
  }
}

module attributes {stable_mosaic.version = 11 : i64} {
  func.func @_matmul_stats_kernel(%arg0: i32, %arg1: i32, %arg2: memref<1x8x128xbf16, #tpu.memory_space<vmem>>, %arg3: memref<1x128x128xbf16, #tpu.memory_space<vmem>>, %arg4: memref<1x8x128xf32, #tpu.memory_space<vmem>>, %arg5: memref<1x8x1xf32, #tpu.memory_space<vmem>>, %arg6: memref<1x8x1xf32, #tpu.memory_space<vmem>>) attributes {dimension_semantics = [#tpu.dimension_semantics<parallel>, #tpu.dimension_semantics<arbitrary>], iteration_bounds = array<i64: 8, 1>, scalar_prefetch = 0 : i64, scratch_operands = 0 : i64, tpu.core_type = #tpu.core_type<tc>, window_params = [{transform_indices = @transform_0, window_bounds = array<i64: 1, 8, 128>}, {transform_indices = @transform_1, window_bounds = array<i64: 1, 128, 128>}, {transform_indices = @transform_2, window_bounds = array<i64: 1, 8, 128>}, {transform_indices = @transform_3, window_bounds = array<i64: 1, 8, 1>}, {transform_indices = @transform_4, window_bounds = array<i64: 1, 8, 1>}]} {
    %c0 = arith.constant 0 : index
    %c0_0 = arith.constant 0 : index
    %c0_1 = arith.constant 0 : index
    %0 = vector.load %arg2[%c0, %c0_0, %c0_1] : memref<1x8x128xbf16, #tpu.memory_space<vmem>>, vector<1x8x128xbf16>
    %1 = vector.shape_cast %0 : vector<1x8x128xbf16> to vector<8x128xbf16>
    %c0_2 = arith.constant 0 : index
    %c0_3 = arith.constant 0 : index
    %c0_4 = arith.constant 0 : index
    %2 = vector.load %arg3[%c0_2, %c0_3, %c0_4] : memref<1x128x128xbf16, #tpu.memory_space<vmem>>, vector<1x128x128xbf16>
    %3 = vector.shape_cast %2 : vector<1x128x128xbf16> to vector<128x128xbf16>
    %cst = arith.constant dense<0.000000e+00> : vector<8x128xf32>
    %4 = tpu.matmul %1, %3, %cst {dimension_numbers = #tpu.dot_dimension_numbers<[1], [0], [0], [1], [0, 0, 1, 1], [], []>} : vector<8x128xbf16>, vector<128x128xbf16>, vector<8x128xf32> -> vector<8x128xf32>
    %c0_5 = arith.constant 0 : index
    %c0_6 = arith.constant 0 : index
    %c0_7 = arith.constant 0 : index
    %5 = vector.load %arg4[%c0_5, %c0_6, %c0_7] : memref<1x8x128xf32, #tpu.memory_space<vmem>>, vector<1x8x128xf32>
    %6 = vector.shape_cast %5 : vector<1x8x128xf32> to vector<8x128xf32>
    %7 = vector.shape_cast %4 : vector<8x128xf32> to vector<1x8x128xf32>
    tpu.vector_store %arg4[%c0_5, %c0_6, %c0_7], %7 {strides = array<i32>} : memref<1x8x128xf32, #tpu.memory_space<vmem>>, vector<1x8x128xf32>,
    %c0_i32 = arith.constant 0 : i32
    %8 = arith.cmpi eq, %arg1, %c0_i32 : i32
    %9 = arith.extui %8 : i1 to i32
    %c0_i32_8 = arith.constant 0 : i32
    %10 = arith.cmpi ne, %9, %c0_i32_8 : i32
    scf.if %10 {
      %cst_23 = arith.constant 0.000000e+00 : f32
      %24 = vector.broadcast %cst_23 : f32 to vector<1x8x1xf32>
      %c0_24 = arith.constant 0 : index
      %c0_25 = arith.constant 0 : index
      %c0_26 = arith.constant 0 : index
      %25 = vector.load %arg5[%c0_24, %c0_25, %c0_26] : memref<1x8x1xf32, #tpu.memory_space<vmem>>, vector<1x8x1xf32>
      tpu.vector_store %arg5[%c0_24, %c0_25, %c0_26], %24 {strides = array<i32>} : memref<1x8x1xf32, #tpu.memory_space<vmem>>, vector<1x8x1xf32>,
      %cst_27 = arith.constant 0.000000e+00 : f32
      %26 = vector.broadcast %cst_27 : f32 to vector<1x8x1xf32>
      %c0_28 = arith.constant 0 : index
      %c0_29 = arith.constant 0 : index
      %c0_30 = arith.constant 0 : index
      %27 = vector.load %arg6[%c0_28, %c0_29, %c0_30] : memref<1x8x1xf32, #tpu.memory_space<vmem>>, vector<1x8x1xf32>
      tpu.vector_store %arg6[%c0_28, %c0_29, %c0_30], %26 {strides = array<i32>} : memref<1x8x1xf32, #tpu.memory_space<vmem>>, vector<1x8x1xf32>,
    } else {
    }
    %c0_9 = arith.constant 0 : index
    %c0_10 = arith.constant 0 : index
    %c0_11 = arith.constant 0 : index
    %11 = vector.load %arg5[%c0_9, %c0_10, %c0_11] : memref<1x8x1xf32, #tpu.memory_space<vmem>>, vector<1x8x1xf32>
    %cst_12 = arith.constant dense<0.000000e+00> : vector<8xf32>
    %12 = vector.multi_reduction <add>, %4, %cst_12 [1] : vector<8x128xf32> to vector<8xf32>
    %13 = vector.shape_cast %12 : vector<8xf32> to vector<8x1xf32>
    %14 = vector.shape_cast %13 : vector<8x1xf32> to vector<1x8x1xf32>
    %15 = arith.addf %11, %14 : vector<1x8x1xf32>
    %c0_13 = arith.constant 0 : index
    %c0_14 = arith.constant 0 : index
    %c0_15 = arith.constant 0 : index
    %16 = vector.load %arg5[%c0_13, %c0_14, %c0_15] : memref<1x8x1xf32, #tpu.memory_space<vmem>>, vector<1x8x1xf32>
    tpu.vector_store %arg5[%c0_13, %c0_14, %c0_15], %15 {strides = array<i32>} : memref<1x8x1xf32, #tpu.memory_space<vmem>>, vector<1x8x1xf32>,
    %c0_16 = arith.constant 0 : index
    %c0_17 = arith.constant 0 : index
    %c0_18 = arith.constant 0 : index
    %17 = vector.load %arg6[%c0_16, %c0_17, %c0_18] : memref<1x8x1xf32, #tpu.memory_space<vmem>>, vector<1x8x1xf32>
    %18 = arith.mulf %4, %4 : vector<8x128xf32>
    %cst_19 = arith.constant dense<0.000000e+00> : vector<8xf32>
    %19 = vector.multi_reduction <add>, %18, %cst_19 [1] : vector<8x128xf32> to vector<8xf32>
    %20 = vector.shape_cast %19 : vector<8xf32> to vector<8x1xf32>
    %21 = vector.shape_cast %20 : vector<8x1xf32> to vector<1x8x1xf32>
    %22 = arith.addf %17, %21 : vector<1x8x1xf32>
    %c0_20 = arith.constant 0 : index
    %c0_21 = arith.constant 0 : index
    %c0_22 = arith.constant 0 : index
    %23 = vector.load %arg6[%c0_20, %c0_21, %c0_22] : memref<1x8x1xf32, #tpu.memory_space<vmem>>, vector<1x8x1xf32>
    tpu.vector_store %arg6[%c0_20, %c0_21, %c0_22], %22 {strides = array<i32>} : memref<1x8x1xf32, #tpu.memory_space<vmem>>, vector<1x8x1xf32>,
    return
  }
  func.func @transform_0(%arg0: i32, %arg1: i32) -> (i32, i32, i32) {
    %c0_i32 = arith.constant 0 : i32
    %c0_i32_0 = arith.constant 0 : i32
    %c0_i32_1 = arith.constant 0 : i32
    return %arg0, %c0_i32, %c0_i32_0 : i32, i32, i32
  }
  func.func @transform_1(%arg0: i32, %arg1: i32) -> (i32, i32, i32) {
    %c0_i32 = arith.constant 0 : i32
    %c0_i32_0 = arith.constant 0 : i32
    return %arg0, %c0_i32, %arg1 : i32, i32, i32
  }
  func.func @transform_2(%arg0: i32, %arg1: i32) -> (i32, i32, i32) {
    %c0_i32 = arith.constant 0 : i32
    %c0_i32_0 = arith.constant 0 : i32
    return %arg0, %c0_i32, %arg1 : i32, i32, i32
  }
  func.func @transform_3(%arg0: i32, %arg1: i32) -> (i32, i32, i32) {
    %c0_i32 = arith.constant 0 : i32
    %c0_i32_0 = arith.constant 0 : i32
    %c0_i32_1 = arith.constant 0 : i32
    return %arg0, %c0_i32, %c0_i32_0 : i32, i32, i32
  }
  func.func @transform_4(%arg0: i32, %arg1: i32) -> (i32, i32, i32) {
    %c0_i32 = arith.constant 0 : i32
    %c0_i32_0 = arith.constant 0 : i32
    %c0_i32_1 = arith.constant 0 : i32
    return %arg0, %c0_i32, %c0_i32_0 : i32, i32, i32
  }
}

module attributes {stable_mosaic.version = 11 : i64} {
  func.func @_bn_relu_apply_kernel(%arg0: i32, %arg1: i32, %arg2: memref<1x8x128xf32, #tpu.memory_space<vmem>>, %arg3: memref<8x1xf32, #tpu.memory_space<vmem>>, %arg4: memref<8x1xf32, #tpu.memory_space<vmem>>, %arg5: memref<1x8x128xbf16, #tpu.memory_space<vmem>>) attributes {dimension_semantics = [#tpu.dimension_semantics<parallel>, #tpu.dimension_semantics<parallel>], iteration_bounds = array<i64: 8, 1>, scalar_prefetch = 0 : i64, scratch_operands = 0 : i64, tpu.core_type = #tpu.core_type<tc>, window_params = [{transform_indices = @transform_0, window_bounds = array<i64: 1, 8, 128>}, {pipeline_mode = #tpu.pipeline_mode<synchronous>, transform_indices = @transform_1, window_bounds = array<i64: 8, 1>}, {pipeline_mode = #tpu.pipeline_mode<synchronous>, transform_indices = @transform_2, window_bounds = array<i64: 8, 1>}, {transform_indices = @transform_3, window_bounds = array<i64: 1, 8, 128>}]} {
    %c0 = arith.constant 0 : index
    %c0_0 = arith.constant 0 : index
    %c0_1 = arith.constant 0 : index
    %0 = vector.load %arg2[%c0, %c0_0, %c0_1] : memref<1x8x128xf32, #tpu.memory_space<vmem>>, vector<1x8x128xf32>
    %1 = vector.shape_cast %0 : vector<1x8x128xf32> to vector<8x128xf32>
    %c0_2 = arith.constant 0 : index
    %c0_3 = arith.constant 0 : index
    %2 = vector.load %arg3[%c0_2, %c0_3] : memref<8x1xf32, #tpu.memory_space<vmem>>, vector<8x1xf32>
    %3 = vector.broadcast %2 : vector<8x1xf32> to vector<8x128xf32>
    %4 = arith.mulf %1, %3 : vector<8x128xf32>
    %c0_4 = arith.constant 0 : index
    %c0_5 = arith.constant 0 : index
    %5 = vector.load %arg4[%c0_4, %c0_5] : memref<8x1xf32, #tpu.memory_space<vmem>>, vector<8x1xf32>
    %6 = vector.broadcast %5 : vector<8x1xf32> to vector<8x128xf32>
    %7 = arith.addf %4, %6 : vector<8x128xf32>
    %cst = arith.constant 0.000000e+00 : f32
    %8 = vector.broadcast %cst : f32 to vector<8x128xf32>
    %9 = arith.maximumf %7, %8 : vector<8x128xf32>
    %10 = arith.truncf %9 : vector<8x128xf32> to vector<8x128xbf16>
    %c0_6 = arith.constant 0 : index
    %c0_7 = arith.constant 0 : index
    %c0_8 = arith.constant 0 : index
    %11 = vector.load %arg5[%c0_6, %c0_7, %c0_8] : memref<1x8x128xbf16, #tpu.memory_space<vmem>>, vector<1x8x128xbf16>
    %12 = vector.shape_cast %11 : vector<1x8x128xbf16> to vector<8x128xbf16>
    %13 = vector.shape_cast %10 : vector<8x128xbf16> to vector<1x8x128xbf16>
    tpu.vector_store %arg5[%c0_6, %c0_7, %c0_8], %13 {strides = array<i32>} : memref<1x8x128xbf16, #tpu.memory_space<vmem>>, vector<1x8x128xbf16>,
    return
  }
  func.func @transform_0(%arg0: i32, %arg1: i32) -> (i32, i32, i32) {
    %c0_i32 = arith.constant 0 : i32
    %c0_i32_0 = arith.constant 0 : i32
    return %arg0, %c0_i32, %arg1 : i32, i32, i32
  }
  func.func @transform_1(%arg0: i32, %arg1: i32) -> (i32, i32) {
    %c0_i32 = arith.constant 0 : i32
    %c0_i32_0 = arith.constant 0 : i32
    %c0_i32_1 = arith.constant 0 : i32
    return %c0_i32, %c0_i32_0 : i32, i32
  }
  func.func @transform_2(%arg0: i32, %arg1: i32) -> (i32, i32) {
    %c0_i32 = arith.constant 0 : i32
    %c0_i32_0 = arith.constant 0 : i32
    %c0_i32_1 = arith.constant 0 : i32
    return %c0_i32, %c0_i32_0 : i32, i32
  }
  func.func @transform_3(%arg0: i32, %arg1: i32) -> (i32, i32, i32) {
    %c0_i32 = arith.constant 0 : i32
    %c0_i32_0 = arith.constant 0 : i32
    return %arg0, %c0_i32, %arg1 : i32, i32, i32
  }
}

module attributes {stable_mosaic.version = 11 : i64} {
  func.func @_matmul_stats_kernel(%arg0: i32, %arg1: i32, %arg2: memref<1x8x64xbf16, #tpu.memory_space<vmem>>, %arg3: memref<1x64x128xbf16, #tpu.memory_space<vmem>>, %arg4: memref<1x8x128xf32, #tpu.memory_space<vmem>>, %arg5: memref<1x8x1xf32, #tpu.memory_space<vmem>>, %arg6: memref<1x8x1xf32, #tpu.memory_space<vmem>>) attributes {dimension_semantics = [#tpu.dimension_semantics<parallel>, #tpu.dimension_semantics<arbitrary>], iteration_bounds = array<i64: 8, 1>, scalar_prefetch = 0 : i64, scratch_operands = 0 : i64, tpu.core_type = #tpu.core_type<tc>, window_params = [{transform_indices = @transform_0, window_bounds = array<i64: 1, 8, 64>}, {transform_indices = @transform_1, window_bounds = array<i64: 1, 64, 128>}, {transform_indices = @transform_2, window_bounds = array<i64: 1, 8, 128>}, {transform_indices = @transform_3, window_bounds = array<i64: 1, 8, 1>}, {transform_indices = @transform_4, window_bounds = array<i64: 1, 8, 1>}]} {
    %c0 = arith.constant 0 : index
    %c0_0 = arith.constant 0 : index
    %c0_1 = arith.constant 0 : index
    %0 = vector.load %arg2[%c0, %c0_0, %c0_1] : memref<1x8x64xbf16, #tpu.memory_space<vmem>>, vector<1x8x64xbf16>
    %1 = vector.shape_cast %0 : vector<1x8x64xbf16> to vector<8x64xbf16>
    %c0_2 = arith.constant 0 : index
    %c0_3 = arith.constant 0 : index
    %c0_4 = arith.constant 0 : index
    %2 = vector.load %arg3[%c0_2, %c0_3, %c0_4] : memref<1x64x128xbf16, #tpu.memory_space<vmem>>, vector<1x64x128xbf16>
    %3 = vector.shape_cast %2 : vector<1x64x128xbf16> to vector<64x128xbf16>
    %cst = arith.constant dense<0.000000e+00> : vector<8x128xf32>
    %4 = tpu.matmul %1, %3, %cst {dimension_numbers = #tpu.dot_dimension_numbers<[1], [0], [0], [1], [0, 0, 1, 1], [], []>} : vector<8x64xbf16>, vector<64x128xbf16>, vector<8x128xf32> -> vector<8x128xf32>
    %c0_5 = arith.constant 0 : index
    %c0_6 = arith.constant 0 : index
    %c0_7 = arith.constant 0 : index
    %5 = vector.load %arg4[%c0_5, %c0_6, %c0_7] : memref<1x8x128xf32, #tpu.memory_space<vmem>>, vector<1x8x128xf32>
    %6 = vector.shape_cast %5 : vector<1x8x128xf32> to vector<8x128xf32>
    %7 = vector.shape_cast %4 : vector<8x128xf32> to vector<1x8x128xf32>
    tpu.vector_store %arg4[%c0_5, %c0_6, %c0_7], %7 {strides = array<i32>} : memref<1x8x128xf32, #tpu.memory_space<vmem>>, vector<1x8x128xf32>,
    %c0_i32 = arith.constant 0 : i32
    %8 = arith.cmpi eq, %arg1, %c0_i32 : i32
    %9 = arith.extui %8 : i1 to i32
    %c0_i32_8 = arith.constant 0 : i32
    %10 = arith.cmpi ne, %9, %c0_i32_8 : i32
    scf.if %10 {
      %cst_23 = arith.constant 0.000000e+00 : f32
      %24 = vector.broadcast %cst_23 : f32 to vector<1x8x1xf32>
      %c0_24 = arith.constant 0 : index
      %c0_25 = arith.constant 0 : index
      %c0_26 = arith.constant 0 : index
      %25 = vector.load %arg5[%c0_24, %c0_25, %c0_26] : memref<1x8x1xf32, #tpu.memory_space<vmem>>, vector<1x8x1xf32>
      tpu.vector_store %arg5[%c0_24, %c0_25, %c0_26], %24 {strides = array<i32>} : memref<1x8x1xf32, #tpu.memory_space<vmem>>, vector<1x8x1xf32>,
      %cst_27 = arith.constant 0.000000e+00 : f32
      %26 = vector.broadcast %cst_27 : f32 to vector<1x8x1xf32>
      %c0_28 = arith.constant 0 : index
      %c0_29 = arith.constant 0 : index
      %c0_30 = arith.constant 0 : index
      %27 = vector.load %arg6[%c0_28, %c0_29, %c0_30] : memref<1x8x1xf32, #tpu.memory_space<vmem>>, vector<1x8x1xf32>
      tpu.vector_store %arg6[%c0_28, %c0_29, %c0_30], %26 {strides = array<i32>} : memref<1x8x1xf32, #tpu.memory_space<vmem>>, vector<1x8x1xf32>,
    } else {
    }
    %c0_9 = arith.constant 0 : index
    %c0_10 = arith.constant 0 : index
    %c0_11 = arith.constant 0 : index
    %11 = vector.load %arg5[%c0_9, %c0_10, %c0_11] : memref<1x8x1xf32, #tpu.memory_space<vmem>>, vector<1x8x1xf32>
    %cst_12 = arith.constant dense<0.000000e+00> : vector<8xf32>
    %12 = vector.multi_reduction <add>, %4, %cst_12 [1] : vector<8x128xf32> to vector<8xf32>
    %13 = vector.shape_cast %12 : vector<8xf32> to vector<8x1xf32>
    %14 = vector.shape_cast %13 : vector<8x1xf32> to vector<1x8x1xf32>
    %15 = arith.addf %11, %14 : vector<1x8x1xf32>
    %c0_13 = arith.constant 0 : index
    %c0_14 = arith.constant 0 : index
    %c0_15 = arith.constant 0 : index
    %16 = vector.load %arg5[%c0_13, %c0_14, %c0_15] : memref<1x8x1xf32, #tpu.memory_space<vmem>>, vector<1x8x1xf32>
    tpu.vector_store %arg5[%c0_13, %c0_14, %c0_15], %15 {strides = array<i32>} : memref<1x8x1xf32, #tpu.memory_space<vmem>>, vector<1x8x1xf32>,
    %c0_16 = arith.constant 0 : index
    %c0_17 = arith.constant 0 : index
    %c0_18 = arith.constant 0 : index
    %17 = vector.load %arg6[%c0_16, %c0_17, %c0_18] : memref<1x8x1xf32, #tpu.memory_space<vmem>>, vector<1x8x1xf32>
    %18 = arith.mulf %4, %4 : vector<8x128xf32>
    %cst_19 = arith.constant dense<0.000000e+00> : vector<8xf32>
    %19 = vector.multi_reduction <add>, %18, %cst_19 [1] : vector<8x128xf32> to vector<8xf32>
    %20 = vector.shape_cast %19 : vector<8xf32> to vector<8x1xf32>
    %21 = vector.shape_cast %20 : vector<8x1xf32> to vector<1x8x1xf32>
    %22 = arith.addf %17, %21 : vector<1x8x1xf32>
    %c0_20 = arith.constant 0 : index
    %c0_21 = arith.constant 0 : index
    %c0_22 = arith.constant 0 : index
    %23 = vector.load %arg6[%c0_20, %c0_21, %c0_22] : memref<1x8x1xf32, #tpu.memory_space<vmem>>, vector<1x8x1xf32>
    tpu.vector_store %arg6[%c0_20, %c0_21, %c0_22], %22 {strides = array<i32>} : memref<1x8x1xf32, #tpu.memory_space<vmem>>, vector<1x8x1xf32>,
    return
  }
  func.func @transform_0(%arg0: i32, %arg1: i32) -> (i32, i32, i32) {
    %c0_i32 = arith.constant 0 : i32
    %c0_i32_0 = arith.constant 0 : i32
    %c0_i32_1 = arith.constant 0 : i32
    return %arg0, %c0_i32, %c0_i32_0 : i32, i32, i32
  }
  func.func @transform_1(%arg0: i32, %arg1: i32) -> (i32, i32, i32) {
    %c0_i32 = arith.constant 0 : i32
    %c0_i32_0 = arith.constant 0 : i32
    return %arg0, %c0_i32, %arg1 : i32, i32, i32
  }
  func.func @transform_2(%arg0: i32, %arg1: i32) -> (i32, i32, i32) {
    %c0_i32 = arith.constant 0 : i32
    %c0_i32_0 = arith.constant 0 : i32
    return %arg0, %c0_i32, %arg1 : i32, i32, i32
  }
  func.func @transform_3(%arg0: i32, %arg1: i32) -> (i32, i32, i32) {
    %c0_i32 = arith.constant 0 : i32
    %c0_i32_0 = arith.constant 0 : i32
    %c0_i32_1 = arith.constant 0 : i32
    return %arg0, %c0_i32, %c0_i32_0 : i32, i32, i32
  }
  func.func @transform_4(%arg0: i32, %arg1: i32) -> (i32, i32, i32) {
    %c0_i32 = arith.constant 0 : i32
    %c0_i32_0 = arith.constant 0 : i32
    %c0_i32_1 = arith.constant 0 : i32
    return %arg0, %c0_i32, %c0_i32_0 : i32, i32, i32
  }
}

module attributes {stable_mosaic.version = 11 : i64} {
  func.func @kern(%arg0: i32, %arg1: i32, %arg2: memref<1x8x32xbf16, #tpu.memory_space<vmem>>, %arg3: memref<1x32x1024xbf16, #tpu.memory_space<vmem>>, %arg4: memref<1x8x1024xf32, #tpu.memory_space<vmem>>) attributes {dimension_semantics = [#tpu.dimension_semantics<parallel>, #tpu.dimension_semantics<parallel>], iteration_bounds = array<i64: 8, 1>, scalar_prefetch = 0 : i64, scratch_operands = 0 : i64, tpu.core_type = #tpu.core_type<tc>, window_params = [{transform_indices = @transform_0, window_bounds = array<i64: 1, 8, 32>}, {transform_indices = @transform_1, window_bounds = array<i64: 1, 32, 1024>}, {transform_indices = @transform_2, window_bounds = array<i64: 1, 8, 1024>}]} {
    %c0 = arith.constant 0 : index
    %c0_0 = arith.constant 0 : index
    %c0_1 = arith.constant 0 : index
    %0 = vector.load %arg2[%c0, %c0_0, %c0_1] : memref<1x8x32xbf16, #tpu.memory_space<vmem>>, vector<1x8x32xbf16>
    %1 = vector.shape_cast %0 : vector<1x8x32xbf16> to vector<8x32xbf16>
    %c0_2 = arith.constant 0 : index
    %c0_3 = arith.constant 0 : index
    %c0_4 = arith.constant 0 : index
    %2 = vector.load %arg3[%c0_2, %c0_3, %c0_4] : memref<1x32x1024xbf16, #tpu.memory_space<vmem>>, vector<1x32x1024xbf16>
    %3 = vector.shape_cast %2 : vector<1x32x1024xbf16> to vector<32x1024xbf16>
    %cst = arith.constant dense<0.000000e+00> : vector<8x1024xf32>
    %4 = tpu.matmul %1, %3, %cst {dimension_numbers = #tpu.dot_dimension_numbers<[1], [0], [0], [1], [0, 0, 1, 1], [], []>} : vector<8x32xbf16>, vector<32x1024xbf16>, vector<8x1024xf32> -> vector<8x1024xf32>
    %cst_5 = arith.constant 0.000000e+00 : f32
    %5 = vector.broadcast %cst_5 : f32 to vector<8x1024xf32>
    %6 = arith.subf %5, %4 : vector<8x1024xf32>
    %7 = math.exp %6 : vector<8x1024xf32>
    %cst_6 = arith.constant 1.000000e+00 : f32
    %8 = vector.broadcast %cst_6 : f32 to vector<8x1024xf32>
    %9 = arith.addf %8, %7 : vector<8x1024xf32>
    %cst_7 = arith.constant 1.000000e+00 : f32
    %10 = vector.broadcast %cst_7 : f32 to vector<8x1024xf32>
    %11 = arith.divf %10, %9 : vector<8x1024xf32>
    %c0_8 = arith.constant 0 : index
    %c0_9 = arith.constant 0 : index
    %c0_10 = arith.constant 0 : index
    %12 = vector.load %arg4[%c0_8, %c0_9, %c0_10] : memref<1x8x1024xf32, #tpu.memory_space<vmem>>, vector<1x8x1024xf32>
    %13 = vector.shape_cast %12 : vector<1x8x1024xf32> to vector<8x1024xf32>
    %14 = vector.shape_cast %11 : vector<8x1024xf32> to vector<1x8x1024xf32>
    tpu.vector_store %arg4[%c0_8, %c0_9, %c0_10], %14 {strides = array<i32>} : memref<1x8x1024xf32, #tpu.memory_space<vmem>>, vector<1x8x1024xf32>,
    return
  }
  func.func @transform_0(%arg0: i32, %arg1: i32) -> (i32, i32, i32) {
    %c0_i32 = arith.constant 0 : i32
    %c0_i32_0 = arith.constant 0 : i32
    %c0_i32_1 = arith.constant 0 : i32
    return %arg0, %c0_i32, %c0_i32_0 : i32, i32, i32
  }
  func.func @transform_1(%arg0: i32, %arg1: i32) -> (i32, i32, i32) {
    %c0_i32 = arith.constant 0 : i32
    %c0_i32_0 = arith.constant 0 : i32
    return %arg0, %c0_i32, %arg1 : i32, i32, i32
  }
  func.func @transform_2(%arg0: i32, %arg1: i32) -> (i32, i32, i32) {
    %c0_i32 = arith.constant 0 : i32
    %c0_i32_0 = arith.constant 0 : i32
    return %arg0, %c0_i32, %arg1 : i32, i32, i32
  }
}

</mosaic_0001>

<llo_original>
// kernel: _forward.8
$region0: #{_forward.8}
  #allocation0 [shape = 'u32[]', space=smem, size = 0x4, offset = 0x4, fixed_abs, tag = 'smem constant byte address 0x4 - core index']
  #allocation1 [shape = 'u32[144,128]{1,0:T(1,128)}', space=vmem, size = 0x12000, scoped, tag = 'internal scratch']
  %s0 = inlined_call_operand.vmem [shape: f32[8,16,128], index: 0, kind: input, shape index: {}]
  %s1 = inlined_call_operand.vmem [shape: f32[16,1], index: 1, kind: input, shape index: {}]
  %s2 = inlined_call_operand.vmem [shape: f32[16,1], index: 2, kind: input, shape index: {}]
  %s3 = inlined_call_operand.vmem [shape: bf16[8,16,128], index: 3, kind: output, shape index: {}]
  %s4 = sld [smem:[#allocation0]]
  $region45: #{_forward.8} parent=0
    _
  %s6 = ssub.s32 1, %s4
  %s7 = scalar_select 0, %s6, %s4
  loop: start=0, step=1, limit=10
  $region2: #{_forward.8} parent=0 // loop_pre_header
    _
  $region3: #{_forward.8} parent=0 // loop_header
    %s9 = sphi 0, %s13
    %p10 = scmp.ge.s32.totalorder %s9, 10
    %s16 = sphi 0, %s28
    %s17 = sphi 0, %s24
    %s18 = sphi 0, %s16
    %s19 = sphi 0, %s17
    %s20 = sphi 0, %s18
    %s21 = sphi 0, %s19
    %s33 = sphi 0, %s35
    %s36 = sphi 0, %s33
    %s37 = sphi 0, %s36
    %s53 = sphi 0, %s37
    %s57 = sphi 0, %s57
    %s59 = sphi 0, %s57
    %s60 = sphi 0, %s59
    %s74 = sphi 0, %s60
    %s78 = sphi 0, %s78
    %s80 = sphi 0, %s78
    %s81 = sphi 0, %s80
    %s95 = sphi 0, %s81
    %s103 = sphi 0, %s105
    %s106 = sphi 0, %s103
    %s107 = sphi 0, %s106
    %s123 = sphi 0, %s107
  $region4: #{_forward.8} parent=0 // loop_header_branch
    %12 = sbr.rel (%p10) target = $region8
  $region5: #{_forward.8} parent=0 // loop_body
    %s14 = ssub.s32 %s9, 1
    %s15 = ssub.s32 %s9, 2
    %s22 = sadd.s32 1, %s17
    %p23 = scmp.ge.s32.totalorder %s22, 1
    %s24 = scalar_select %p23, 0, %s22
    %s25 = sadd.s32 1, %s16
    %s26 = scalar_select %p23, %s25, %s16
    %p27 = scmp.ge.s32.totalorder %s26, 8
    %s28 = scalar_select %p27, 0, %s26
    %s29 = ssub.s32 %s16, %s28
    %s30 = ssub.s32 %s17, %s24
    %s31 = sor.u32 %s29, %s30
    %p32 = scmp.eq.s32.totalorder %s31, 0
    %s34 = sadd.s32 %s33, 1
    %s35 = scalar_select %p32, %s33, %s34
    %p38 = pneg %p32
    %p39 = scmp.eq.s32.totalorder %s9, 7
    %p40 = por %p38, %p39
    %p41 = scmp.ne.s32.totalorder %s33, %s36
    %p42 = scmp.eq.s32.totalorder %s9, 0
    %p43 = por %p41, %p42
    %p44 = scmp.ne.s32.totalorder %s33, %s36
    %p45 = scmp.eq.s32.totalorder %s14, 7
    %p46 = por %p44, %p45
    %p47 = scmp.ne.s32.totalorder %s36, %s37
    %p48 = scmp.eq.s32.totalorder %s14, 0
    %p49 = por %p47, %p48
    %p50 = scmp.ne.s32.totalorder %s36, %s37
    %p51 = scmp.eq.s32.totalorder %s15, 7
    %p52 = por %p50, %p51
    %p54 = scmp.ne.s32.totalorder %s37, %s53
    %p55 = scmp.eq.s32.totalorder %s15, 0
    %p56 = por %p54, %p55
    %s58 = sadd.s32 %s57, 1
    %p61 = scmp.eq.s32.totalorder %s9, 7
    %p62 = scmp.ne.s32.totalorder %s57, %s59
    %p63 = scmp.eq.s32.totalorder %s9, 0
    %p64 = por %p62, %p63
    %p65 = scmp.ne.s32.totalorder %s57, %s59
    %p66 = scmp.eq.s32.totalorder %s14, 7
    %p67 = por %p65, %p66
    %p68 = scmp.ne.s32.totalorder %s59, %s60
    %p69 = scmp.eq.s32.totalorder %s14, 0
    %p70 = por %p68, %p69
    %p71 = scmp.ne.s32.totalorder %s59, %s60
    %p72 = scmp.eq.s32.totalorder %s15, 7
    %p73 = por %p71, %p72
    %p75 = scmp.ne.s32.totalorder %s60, %s74
    %p76 = scmp.eq.s32.totalorder %s15, 0
    %p77 = por %p75, %p76
    %s79 = sadd.s32 %s78, 1
    %p82 = scmp.eq.s32.totalorder %s9, 7
    %p83 = scmp.ne.s32.totalorder %s78, %s80
    %p84 = scmp.eq.s32.totalorder %s9, 0
    %p85 = por %p83, %p84
    %p86 = scmp.ne.s32.totalorder %s78, %s80
    %p87 = scmp.eq.s32.totalorder %s14, 7
    %p88 = por %p86, %p87
    %p89 = scmp.ne.s32.totalorder %s80, %s81
    %p90 = scmp.eq.s32.totalorder %s14, 0
    %p91 = por %p89, %p90
    %p92 = scmp.ne.s32.totalorder %s80, %s81
    %p93 = scmp.eq.s32.totalorder %s15, 7
    %p94 = por %p92, %p93
    %p96 = scmp.ne.s32.totalorder %s81, %s95
    %p97 = scmp.eq.s32.totalorder %s15, 0
    %p98 = por %p96, %p97
    %s99 = ssub.s32 %s16, %s28
    %s100 = ssub.s32 %s17, %s24
    %s101 = sor.u32 %s99, %s100
    %p102 = scmp.eq.s32.totalorder %s101, 0
    %s104 = sadd.s32 %s103, 1
    %s105 = scalar_select %p102, %s103, %s104
    %p108 = pneg %p102
    %p109 = scmp.eq.s32.totalorder %s9, 7
    %p110 = por %p108, %p109
    %p111 = scmp.ne.s32.totalorder %s103, %s106
    %p112 = scmp.eq.s32.totalorder %s9, 0
    %p113 = por %p111, %p112
    %p114 = scmp.ne.s32.totalorder %s103, %s106
    %p115 = scmp.eq.s32.totalorder %s14, 7
    %p116 = por %p114, %p115
    %p117 = scmp.ne.s32.totalorder %s106, %s107
    %p118 = scmp.eq.s32.totalorder %s14, 0
    %p119 = por %p117, %p118
    %p120 = scmp.ne.s32.totalorder %s106, %s107
    %p121 = scmp.eq.s32.totalorder %s15, 7
    %p122 = por %p120, %p121
    %p124 = scmp.ne.s32.totalorder %s107, %s123
    %p125 = scmp.eq.s32.totalorder %s15, 0
    %p126 = por %p124, %p125
    %p127 = scmp.le.s32.totalorder 1, %s9
    %p128 = scmp.lt.s32.totalorder %s9, 9
    %p129 = pnand %p127, %p128
    %p130 = pneg %p129
    // Predicated region
    $region9: #{_forward.8} parent=5 // pred_check
      _
    $region10: #{_forward.8} parent=5 // pred_check_branch
      %132 = sbr.rel (%p129) target = $region12
    $region11: #{_forward.8} parent=5 // pred_region
      %s133 = ssub.s32 %s9, 1
      // Predicated region
      $region13: #{_forward.8} parent=11 // pred_check
        %p134 = pneg %p70
      $region14: #{_forward.8} parent=11 // pred_check_branch
        %136 = sbr.rel (%p134) target = $region16
      $region15: #{_forward.8} parent=11 // pred_region
        _
      $region16: #{_forward.8} parent=11 // pred_fallthru
        _
      // Predicated region
      $region17: #{_forward.8} parent=11 // pred_check
        %p137 = pneg %p91
      $region18: #{_forward.8} parent=11 // pred_check_branch
        %139 = sbr.rel (%p137) target = $region20
      $region19: #{_forward.8} parent=11 // pred_region
        _
      $region20: #{_forward.8} parent=11 // pred_fallthru
        _
    $region12: #{_forward.8} parent=5 // pred_fallthru
      _
    %p140 = scmp.lt.s32.totalorder %s9, 8
    // Predicated region
    $region21: #{_forward.8} parent=5 // pred_check
      %p141 = pneg %p140
    $region22: #{_forward.8} parent=5 // pred_check_branch
      %143 = sbr.rel (%p141) target = $region24
    $region23: #{_forward.8} parent=5 // pred_region
      // Predicated region
      $region25: #{_forward.8} parent=23 // pred_check
        %p144 = pneg %p43
      $region26: #{_forward.8} parent=23 // pred_check_branch
        %146 = sbr.rel (%p144) target = $region28
      $region27: #{_forward.8} parent=23 // pred_region
        %p147 = scmp.lt.s32.totalorder %s16, 7
        %s148 = scalar_select %p147, %s16, 7
        %p149 = scmp.lt.s32.totalorder %s17, 0
        %s150 = scalar_select %p149, %s17, 0
        %s151 = smul.addr %s148, 2
        %s152 = sadd.s32 %s150, %s151
        %s153 = smul.addr %s152, 8
        %s154 = scalar_lea.vmem %s0, %s153
      $region28: #{_forward.8} parent=23 // pred_fallthru
        _
    $region24: #{_forward.8} parent=5 // pred_fallthru
      _
    %p155 = scmp.le.s32.totalorder 1, %s9
    %p156 = scmp.lt.s32.totalorder %s9, 9
    %p157 = pnand %p155, %p156
    %p158 = pneg %p157
    // Predicated region
    $region29: #{_forward.8} parent=5 // pred_check
      _
    $region30: #{_forward.8} parent=5 // pred_check_branch
      %160 = sbr.rel (%p157) target = $region32
    $region31: #{_forward.8} parent=5 // pred_region
      %s161 = ssub.s32 %s9, 1
      %p162 = scmp.lt.s32.totalorder %s18, 7
      %s163 = scalar_select %p162, %s18, 7
      %p164 = scmp.lt.s32.totalorder %s19, 0
      %s165 = scalar_select %p164, %s19, 0
      %s166 = smul.addr %s163, 2
      %s167 = sadd.s32 %s165, %s166
      %s168 = smul.addr %s167, 8
      %s169 = scalar_lea.vmem %s0, %s168
      %p170 = pneg %p49
      %p171 = pneg %p46
      %p172 = pneg %p70
      %p173 = pneg %p67
      %p174 = pneg %p91
      %p175 = pneg %p88
      %p176 = pneg %p119
      %p177 = pneg %p116
      %p178 = scmp.lt.s32.totalorder %s18, 7
      %s179 = scalar_select %p178, %s18, 7
      %p180 = scmp.lt.s32.totalorder %s19, 0
      %s181 = scalar_select %p180, %s19, 0
      %s182 = smul.addr %s179, 2
      %s183 = sadd.s32 %s181, %s182
      %s184 = smul.addr %s183, 4
      %s185 = scalar_lea.vmem %s3, %s184
      %p186 = scmp.lt.s32.totalorder %s18, 7
      %s187 = scalar_select %p186, %s18, 7
      %p188 = scmp.lt.s32.totalorder %s19, 0
      %s189 = scalar_select %p188, %s19, 0
      %s190 = smul.addr %s187, 2
      %s191 = sadd.s32 %s189, %s190
      %s192 = smul.addr %s191, 8
      %s193 = scalar_lea.vmem %s0, %s192
      %p194 = scmp.lt.s32.totalorder %s18, 7
      %s195 = scalar_select %p194, %s18, 7
      %p196 = scmp.lt.s32.totalorder %s19, 0
      %s197 = scalar_select %p196, %s19, 0
      %s198 = smul.addr %s195, 2
      %s199 = sadd.s32 %s197, %s198
      %s200 = smul.addr %s199, 4
      %s201 = scalar_lea.vmem %s3, %s200
      %v202 = vld [vmem:[%s193] sm:$0xff]
      %v203 = vld [vmem:[%s193 + $0x8] sm:$0xff]
      %v204 = vld [vmem:[%s1] sm:$0xff]
      %v205 = vld [vmem:[%s1 + $0x8] sm:$0xff]
      %207 = vset.pattern.permute.xlu0 0
      %208 = vperm.xlu0 %207, %v204
      %v209 = vpop.permute.xlu0 %208
      %212 = vset.pattern.permute.xlu0 0
      %213 = vperm.xlu0 %212, %v205
      %v214 = vpop.permute.xlu0 %213
      %v216 = vmul.f32 %v202, %v209
      %v217 = vmul.f32 %v203, %v214
      %v218 = vld [vmem:[%s2] sm:$0xff]
      %v219 = vld [vmem:[%s2 + $0x8] sm:$0xff]
      %221 = vset.pattern.permute.xlu0 0
      %222 = vperm.xlu0 %221, %v218
      %v223 = vpop.permute.xlu0 %222
      %226 = vset.pattern.permute.xlu0 0
      %227 = vperm.xlu0 %226, %v219
      %v228 = vpop.permute.xlu0 %227
      %v230 = vadd.f32 %v216, %v223
      %v231 = vadd.f32 %v217, %v228
      %v232 = vmax.f32 %v230, 0.0
      %v233 = vmax.f32 %v231, 0.0
      %v234 = vpack.c.bf16 %v233, %v232
      %v236 = vunpack.c.l.b16 %v234
      %v237 = vunpack.c.h.b16 %v234
      %v238 = vpack.c.b16 %v236, %v236
      %v239 = vpack.c.b16 %v237, %v237
      %242 = vst [vmem:[%s201] sm:$0xf] %v238
      %243 = vst [vmem:[%s201 + $0x4] sm:$0xf] %v239
      %p244 = scmp.lt.s32.totalorder %s18, 7
      %s245 = scalar_select %p244, %s18, 7
      %p246 = scmp.lt.s32.totalorder %s19, 0
      %s247 = scalar_select %p246, %s19, 0
      %s248 = smul.addr %s245, 2
      %s249 = sadd.s32 %s247, %s248
      %s250 = smul.addr %s249, 4
      %s251 = scalar_lea.vmem %s3, %s250
      // Predicated region
      $region33: #{_forward.8} parent=31 // pred_check
        %p252 = pneg %p116
      $region34: #{_forward.8} parent=31 // pred_check_branch
        %254 = sbr.rel (%p252) target = $region36
      $region35: #{_forward.8} parent=31 // pred_region
        _
      $region36: #{_forward.8} parent=31 // pred_fallthru
        _
    $region32: #{_forward.8} parent=5 // pred_fallthru
      _
    %p255 = scmp.le.s32.totalorder 2, %s9
    // Predicated region
    $region37: #{_forward.8} parent=5 // pred_check
      %p256 = pneg %p255
    $region38: #{_forward.8} parent=5 // pred_check_branch
      %258 = sbr.rel (%p256) target = $region40
    $region39: #{_forward.8} parent=5 // pred_region
      %s259 = ssub.s32 %s9, 2
      // Predicated region
      $region41: #{_forward.8} parent=39 // pred_check
        %p260 = pneg %p122
      $region42: #{_forward.8} parent=39 // pred_check_branch
        %262 = sbr.rel (%p260) target = $region44
      $region43: #{_forward.8} parent=39 // pred_region
        %p263 = scmp.lt.s32.totalorder %s20, 7
        %s264 = scalar_select %p263, %s20, 7
        %p265 = scmp.lt.s32.totalorder %s21, 0
        %s266 = scalar_select %p265, %s21, 0
        %s267 = smul.addr %s264, 2
        %s268 = sadd.s32 %s266, %s267
        %s269 = smul.addr %s268, 4
        %s270 = scalar_lea.vmem %s3, %s269
      $region44: #{_forward.8} parent=39 // pred_fallthru
        _
    $region40: #{_forward.8} parent=5 // pred_fallthru
      _
  $region6: #{_forward.8} parent=0 // loop_footer
    %s13 = sadd.s32 1, %s9
  $region7: #{_forward.8} parent=0 // loop_footer_branch
    %8 = sbr.rel target = $region3
  $region8: #{_forward.8} parent=0 // loop_exit
    _

// kernel: _forward.7
$region0: #{_forward.7}
  #allocation0 [shape = 'u32[]', space=smem, size = 0x4, offset = 0x4, fixed_abs, tag = 'smem constant byte address 0x4 - core index']
  #allocation1 [shape = 'u32[144,128]{1,0:T(1,128)}', space=vmem, size = 0x12000, scoped, tag = 'internal scratch']
  %s0 = inlined_call_operand.hbm [shape: bf16[8,16,24], index: 0, kind: input, shape index: {}]
  %s1 = inlined_call_operand.vmem [shape: bf16[1,24,128], index: 1, kind: input, shape index: {}]
  %s2 = inlined_call_operand.vmem [shape: f32[8,16,128], index: 2, kind: output, shape index: {0}]
  %s3 = inlined_call_operand.vmem [shape: f32[8,16,1], index: 3, kind: output, shape index: {1}]
  %s4 = inlined_call_operand.vmem [shape: f32[8,16,1], index: 4, kind: output, shape index: {2}]
  %5 = xla_tuple %s2, %s3, %s4
  %s6 = sld [smem:[#allocation0]]
  $region65: #{_forward.7} parent=0
    _
  %s8 = ssub.s32 1, %s6
  %s9 = scalar_select 0, %s8, %s6
  $region1: #{_forward.7} parent=0
    #allocation2 [shape = 'u8[8192]{0}', space=vmem, size = 0x2000, scoped, tag = 'input window, operand 0']
    #allocation3 [shape = 's32[2]{0}', space=sflag, size = 0x8, scoped, tag = 'scoped memory for _forward.7']
    %10 = vsyncpa [#allocation3], 0
    %s11 = scalar_lea.sflag [#allocation3], 1
    %12 = vsyncpa %s11, 0
    loop: start=0, step=1, limit=10
    $region2: #{_forward.7} parent=1 // loop_pre_header
      _
    $region3: #{_forward.7} parent=1 // loop_header
      %s14 = sphi 0, %s18
      %p15 = scmp.ge.s32.totalorder %s14, 10
      %s21 = sphi 0, %s33
      %s22 = sphi 0, %s29
      %s23 = sphi 0, %s21
      %s24 = sphi 0, %s22
      %s25 = sphi 0, %s23
      %s26 = sphi 0, %s24
      %s36 = sphi 0, %s38
      %s39 = sphi 0, %s36
      %s40 = sphi 0, %s39
      %s56 = sphi 0, %s40
      %s62 = sphi 0, %s64
      %s65 = sphi 0, %s62
      %s66 = sphi 0, %s65
      %s82 = sphi 0, %s66
      %s90 = sphi 0, %s92
      %s93 = sphi 0, %s90
      %s94 = sphi 0, %s93
      %s110 = sphi 0, %s94
      %s116 = sphi 0, %s118
      %s119 = sphi 0, %s116
      %s120 = sphi 0, %s119
      %s136 = sphi 0, %s120
      %s142 = sphi 0, %s144
      %s145 = sphi 0, %s142
      %s146 = sphi 0, %s145
      %s162 = sphi 0, %s146
    $region4: #{_forward.7} parent=1 // loop_header_branch
      %17 = sbr.rel (%p15) target = $region8
    $region5: #{_forward.7} parent=1 // loop_body
      %s19 = ssub.s32 %s14, 1
      %s20 = ssub.s32 %s14, 2
      %s27 = sadd.s32 1, %s22
      %p28 = scmp.ge.s32.totalorder %s27, 1
      %s29 = scalar_select %p28, 0, %s27
      %s30 = sadd.s32 1, %s21
      %s31 = scalar_select %p28, %s30, %s21
      %p32 = scmp.ge.s32.totalorder %s31, 8
      %s33 = scalar_select %p32, 0, %s31
      %s34 = ssub.s32 %s21, %s33
      %p35 = scmp.eq.s32.totalorder %s34, 0
      %s37 = sadd.s32 %s36, 1
      %s38 = scalar_select %p35, %s36, %s37
      %p41 = pneg %p35
      %p42 = scmp.eq.s32.totalorder %s14, 7
      %p43 = por %p41, %p42
      %p44 = scmp.ne.s32.totalorder %s36, %s39
      %p45 = scmp.eq.s32.totalorder %s14, 0
      %p46 = por %p44, %p45
      %p47 = scmp.ne.s32.totalorder %s36, %s39
      %p48 = scmp.eq.s32.totalorder %s19, 7
      %p49 = por %p47, %p48
      %p50 = scmp.ne.s32.totalorder %s39, %s40
      %p51 = scmp.eq.s32.totalorder %s19, 0
      %p52 = por %p50, %p51
      %p53 = scmp.ne.s32.totalorder %s39, %s40
      %p54 = scmp.eq.s32.totalorder %s20, 7
      %p55 = por %p53, %p54
      %p57 = scmp.ne.s32.totalorder %s40, %s56
      %p58 = scmp.eq.s32.totalorder %s20, 0
      %p59 = por %p57, %p58
      %s60 = ssub.s32 %s22, %s29
      %p61 = scmp.eq.s32.totalorder %s60, 0
      %s63 = sadd.s32 %s62, 1
      %s64 = scalar_select %p61, %s62, %s63
      %p67 = pneg %p61
      %p68 = scmp.eq.s32.totalorder %s14, 7
      %p69 = por %p67, %p68
      %p70 = scmp.ne.s32.totalorder %s62, %s65
      %p71 = scmp.eq.s32.totalorder %s14, 0
      %p72 = por %p70, %p71
      %p73 = scmp.ne.s32.totalorder %s62, %s65
      %p74 = scmp.eq.s32.totalorder %s19, 7
      %p75 = por %p73, %p74
      %p76 = scmp.ne.s32.totalorder %s65, %s66
      %p77 = scmp.eq.s32.totalorder %s19, 0
      %p78 = por %p76, %p77
      %p79 = scmp.ne.s32.totalorder %s65, %s66
      %p80 = scmp.eq.s32.totalorder %s20, 7
      %p81 = por %p79, %p80
      %p83 = scmp.ne.s32.totalorder %s66, %s82
      %p84 = scmp.eq.s32.totalorder %s20, 0
      %p85 = por %p83, %p84
      %s86 = ssub.s32 %s21, %s33
      %s87 = ssub.s32 %s22, %s29
      %s88 = sor.u32 %s86, %s87
      %p89 = scmp.eq.s32.totalorder %s88, 0
      %s91 = sadd.s32 %s90, 1
      %s92 = scalar_select %p89, %s90, %s91
      %p95 = pneg %p89
      %p96 = scmp.eq.s32.totalorder %s14, 7
      %p97 = por %p95, %p96
      %p98 = scmp.ne.s32.totalorder %s90, %s93
      %p99 = scmp.eq.s32.totalorder %s14, 0
      %p100 = por %p98, %p99
      %p101 = scmp.ne.s32.totalorder %s90, %s93
      %p102 = scmp.eq.s32.totalorder %s19, 7
      %p103 = por %p101, %p102
      %p104 = scmp.ne.s32.totalorder %s93, %s94
      %p105 = scmp.eq.s32.totalorder %s19, 0
      %p106 = por %p104, %p105
      %p107 = scmp.ne.s32.totalorder %s93, %s94
      %p108 = scmp.eq.s32.totalorder %s20, 7
      %p109 = por %p107, %p108
      %p111 = scmp.ne.s32.totalorder %s94, %s110
      %p112 = scmp.eq.s32.totalorder %s20, 0
      %p113 = por %p111, %p112
      %s114 = ssub.s32 %s21, %s33
      %p115 = scmp.eq.s32.totalorder %s114, 0
      %s117 = sadd.s32 %s116, 1
      %s118 = scalar_select %p115, %s116, %s117
      %p121 = pneg %p115
      %p122 = scmp.eq.s32.totalorder %s14, 7
      %p123 = por %p121, %p122
      %p124 = scmp.ne.s32.totalorder %s116, %s119
      %p125 = scmp.eq.s32.totalorder %s14, 0
      %p126 = por %p124, %p125
      %p127 = scmp.ne.s32.totalorder %s116, %s119
      %p128 = scmp.eq.s32.totalorder %s19, 7
      %p129 = por %p127, %p128
      %p130 = scmp.ne.s32.totalorder %s119, %s120
      %p131 = scmp.eq.s32.totalorder %s19, 0
      %p132 = por %p130, %p131
      %p133 = scmp.ne.s32.totalorder %s119, %s120
      %p134 = scmp.eq.s32.totalorder %s20, 7
      %p135 = por %p133, %p134
      %p137 = scmp.ne.s32.totalorder %s120, %s136
      %p138 = scmp.eq.s32.totalorder %s20, 0
      %p139 = por %p137, %p138
      %s140 = ssub.s32 %s21, %s33
      %p141 = scmp.eq.s32.totalorder %s140, 0
      %s143 = sadd.s32 %s142, 1
      %s144 = scalar_select %p141, %s142, %s143
      %p147 = pneg %p141
      %p148 = scmp.eq.s32.totalorder %s14, 7
      %p149 = por %p147, %p148
      %p150 = scmp.ne.s32.totalorder %s142, %s145
      %p151 = scmp.eq.s32.totalorder %s14, 0
      %p152 = por %p150, %p151
      %p153 = scmp.ne.s32.totalorder %s142, %s145
      %p154 = scmp.eq.s32.totalorder %s19, 7
      %p155 = por %p153, %p154
      %p156 = scmp.ne.s32.totalorder %s145, %s146
      %p157 = scmp.eq.s32.totalorder %s19, 0
      %p158 = por %p156, %p157
      %p159 = scmp.ne.s32.totalorder %s145, %s146
      %p160 = scmp.eq.s32.totalorder %s20, 7
      %p161 = por %p159, %p160
      %p163 = scmp.ne.s32.totalorder %s146, %s162
      %p164 = scmp.eq.s32.totalorder %s20, 0
      %p165 = por %p163, %p164
      %p166 = scmp.le.s32.totalorder 1, %s14
      %p167 = scmp.lt.s32.totalorder %s14, 9
      %p168 = pnand %p166, %p167
      %p169 = pneg %p168
      // Predicated region
      $region9: #{_forward.7} parent=5 // pred_check
        _
      $region10: #{_forward.7} parent=5 // pred_check_branch
        %171 = sbr.rel (%p168) target = $region12
      $region11: #{_forward.7} parent=5 // pred_region
        %s172 = ssub.s32 %s14, 1
        // Predicated region
        $region13: #{_forward.7} parent=11 // pred_check
          %p173 = pneg %p78
        $region14: #{_forward.7} parent=11 // pred_check_branch
          %175 = sbr.rel (%p173) target = $region16
        $region15: #{_forward.7} parent=11 // pred_region
          %p176 = scmp.lt.s32.totalorder %s24, 0
          %s177 = scalar_select %p176, %s24, 0
          %s178 = smul.addr %s177, 4
          %s179 = scalar_lea.vmem %s1, %s178
        $region16: #{_forward.7} parent=11 // pred_fallthru
          _
      $region12: #{_forward.7} parent=5 // pred_fallthru
        _
      %p180 = scmp.lt.s32.totalorder %s14, 8
      // Predicated region
      $region17: #{_forward.7} parent=5 // pred_check
        %p181 = pneg %p180
      $region18: #{_forward.7} parent=5 // pred_check_branch
        %183 = sbr.rel (%p181) target = $region20
      $region19: #{_forward.7} parent=5 // pred_region
        // Predicated region
        $region21: #{_forward.7} parent=19 // pred_check
          %p184 = pneg %p46
        $region22: #{_forward.7} parent=19 // pred_check_branch
          %186 = sbr.rel (%p184) target = $region24
        $region23: #{_forward.7} parent=19 // pred_region
          %s187 = sand.u32 %s36, 1
          %s188 = scalar_lea.sflag [#allocation3], %s187
          %s189 = sand.u32 %s36, 1
          %s190 = smul.addr %s189, 8
          %s191 = scalar_lea.vmem [#allocation2], %s190
          %s193 = ssub.s32 128, 128
          %194 = vsyncadd %s188, %s193
          %s195 = smul.addr %s21, 2
          %s196 = smul.addr %s195, 64
          %s197 = scalar_lea.hbm %s0, %s196
          %s198 = sshll.u32 %s191, 4
          %s199 = int_to_ptr.vmem [resolvable:$true] %s198
          %204 = dma.hbm_to_vmem [thread:$0]  %s197, 128, %s199, %s188, 64, 64, 4
        $region24: #{_forward.7} parent=19 // pred_fallthru
          _
      $region20: #{_forward.7} parent=5 // pred_fallthru
        _
      %p205 = scmp.le.s32.totalorder 1, %s14
      %p206 = scmp.lt.s32.totalorder %s14, 9
      %p207 = pnand %p205, %p206
      %p208 = pneg %p207
      // Predicated region
      $region25: #{_forward.7} parent=5 // pred_check
        _
      $region26: #{_forward.7} parent=5 // pred_check_branch
        %210 = sbr.rel (%p207) target = $region28
      $region27: #{_forward.7} parent=5 // pred_region
        %s211 = ssub.s32 %s14, 1
        %s212 = sand.u32 %s39, 1
        %s213 = scalar_lea.sflag [#allocation3], %s212
        %s214 = sand.u32 %s39, 1
        %s215 = smul.addr %s214, 8
        %s216 = scalar_lea.vmem [#allocation2], %s215
        // Predicated region
        $region29: #{_forward.7} parent=27 // pred_check
          %p217 = pneg %p52
        $region30: #{_forward.7} parent=27 // pred_check_branch
          %219 = sbr.rel (%p217) target = $region32
        $region31: #{_forward.7} parent=27 // pred_region
          %220 = dma.done %s213, 128
        $region32: #{_forward.7} parent=27 // pred_fallthru
          _
        %s221 = sand.u32 %s39, 1
        %s222 = scalar_lea.sflag [#allocation3], %s221
        %s223 = sand.u32 %s39, 1
        %s224 = smul.addr %s223, 8
        %s225 = scalar_lea.vmem [#allocation2], %s224
        %p226 = pneg %p52
        %p227 = pneg %p49
        %p228 = scmp.lt.s32.totalorder %s24, 0
        %s229 = scalar_select %p228, %s24, 0
        %s230 = smul.addr %s229, 4
        %s231 = scalar_lea.vmem %s1, %s230
        %p232 = pneg %p78
        %p233 = pneg %p75
        %p234 = pneg %p106
        %p235 = pneg %p103
        %p236 = scmp.lt.s32.totalorder %s23, 7
        %s237 = scalar_select %p236, %s23, 7
        %p238 = scmp.lt.s32.totalorder %s24, 0
        %s239 = scalar_select %p238, %s24, 0
        %s240 = smul.addr %s237, 2
        %s241 = sadd.s32 %s239, %s240
        %s242 = smul.addr %s241, 8
        %s243 = scalar_lea.vmem %s2, %s242
        %p244 = pneg %p132
        %p245 = pneg %p129
        %p246 = scmp.lt.s32.totalorder %s23, 7
        %s247 = scalar_select %p246, %s23, 7
        %s248 = smul.addr %s247, 2
        %s249 = smul.addr %s248, 8
        %s250 = scalar_lea.vmem %s3, %s249
        %p251 = pneg %p158
        %p252 = pneg %p155
        %p253 = scmp.lt.s32.totalorder %s23, 7
        %s254 = scalar_select %p253, %s23, 7
        %s255 = smul.addr %s254, 2
        %s256 = smul.addr %s255, 8
        %s257 = scalar_lea.vmem %s4, %s256
        %p258 = scmp.lt.s32.totalorder %s24, 0
        %s259 = scalar_select %p258, %s24, 0
        %s260 = smul.addr %s259, 4
        %s261 = scalar_lea.vmem %s1, %s260
        %p262 = scmp.lt.s32.totalorder %s23, 7
        %s263 = scalar_select %p262, %s23, 7
        %p264 = scmp.lt.s32.totalorder %s24, 0
        %s265 = scalar_select %p264, %s24, 0
        %s266 = smul.addr %s263, 2
        %s267 = sadd.s32 %s265, %s266
        %s268 = smul.addr %s267, 8
        %s269 = scalar_lea.vmem %s2, %s268
        %p270 = scmp.lt.s32.totalorder %s23, 7
        %s271 = scalar_select %p270, %s23, 7
        %s272 = smul.addr %s271, 2
        %s273 = smul.addr %s272, 8
        %s274 = scalar_lea.vmem %s3, %s273
        %p275 = scmp.lt.s32.totalorder %s23, 7
        %s276 = scalar_select %p275, %s23, 7
        %s277 = smul.addr %s276, 2
        %s278 = smul.addr %s277, 8
        %s279 = scalar_lea.vmem %s4, %s278
        %v281 = vld [vmem:[%s216] sm:$0xf]
        %v282 = vld [vmem:[%s216 + $0x4] sm:$0xf]
        %v283 = vld [vmem:[%s261] sm:$0xf]
        %v284 = vld [vmem:[%s261 + $0x4] sm:$0xf]
        %v285 = vld [vmem:[%s261 + $0x8] sm:$0xf]
        %v288 = vunpack.c.l.b16 %v281
        %v289 = vunpack.c.l.b16 %v282
        %v290 = vpack.c.b16 %v289, %v288
        %v294 = vunpack.c.l.b16 %v283
        %v295 = vunpack.c.l.b16 %v284
        %v296 = vunpack.c.l.b16 %v285
        %v297 = vpack.c.b16 %v295, %v294
        %v298 = vpack.c.b16 %v296, %v296
        %vm300 = vcmask 195584
        %v302 = vsel %vm300, %v290, 0
        %vm304 = vcmask 1043456
        %v306 = vsel %vm304, %v298, 0
        %308 = vmatprep.subr.bf16.mxu0 0
        %309 = vmatpush1.bf16.msra.mxu0 0
        %310 = vmatprep.subr.bf16.mxu0 0
        %311 = vmatpush1.bf16.msra.mxu0 0
        %312 = vmatprep.subr.bf16.mxu0 0
        %313 = vmatpush1.bf16.msra.mxu0 0
        %314 = vmatprep.subr.bf16.mxu0 0
        %315 = vmatpush1.bf16.msra.mxu0 0
        %316 = vmatprep.subr.bf16.mxu0 0
        %317 = vmatpush1.bf16.msra.mxu0 0
        %318 = vmatprep.subr.bf16.mxu0 0
        %319 = vmatpush1.bf16.msra.mxu0 0
        %320 = vmatprep.subr.bf16.mxu0 0
        %321 = vmatpush1.bf16.msra.mxu0 %v306
        %322 = vmatprep.subr.bf16.mxu0 0
        %323 = vmatpush1.bf16.msra.mxu0 %v297
        %324 = vmatprep.subr.bf16.mxu0 0
        %325 = vmatpush2.bf16.msra.mxu0 0
        %326 = vmatprep.subr.bf16.mxu0 0
        %327 = vmatpush2.bf16.msra.mxu0 0
        %328 = vmatprep.subr.bf16.mxu0 0
        %329 = vmatpush2.bf16.msra.mxu0 0
        %330 = vmatprep.subr.bf16.mxu0 0
        %331 = vmatpush2.bf16.msra.mxu0 0
        %332 = vmatprep.subr.bf16.mxu0 0
        %333 = vmatpush2.bf16.msra.mxu0 0
        %334 = vmatprep.subr.bf16.mxu0 0
        %335 = vmatpush2.bf16.msra.mxu0 0
        %336 = vmatprep.subr.bf16.mxu0 0
        %337 = vmatpush2.bf16.msra.mxu0 0
        %338 = vmatprep.subr.bf16.mxu0 0
        %339 = vmatpush2.bf16.msra.mxu0 0
        %340 = vmatprep.mubr.bf16.mxu0 0
        %341 = vmatmul.mubr.bf16.gmra.mxu0 %v302
        %v342 = vpop.f32.mrf.mxu0
        %v343 = vadd.f32 0.0, %v342
        %v344 = vpop.f32.mrf.mxu0
        %v345 = vpop.f32.mrf.mxu0
        %v346 = vadd.f32 0.0, %v345
        %v347 = vpop.f32.mrf.mxu0
        %348 = vdwg.mxu0
        %349 = vst [vmem:[%s269] sm:$0xff] %v343
        %350 = vst [vmem:[%s269 + $0x8] sm:$0xff] %v346
        %p351 = scmp.eq.s32.totalorder %s24, 0
        // Predicated region
        $region33: #{_forward.7} parent=27 // pred_check
          %p352 = pneg %p351
        $region34: #{_forward.7} parent=27 // pred_check_branch
          %354 = sbr.rel (%p352) target = $region36
        $region35: #{_forward.7} parent=27 // pred_region
          %vm355 = vcmask 7168
          %356 = vst.msk [vmem:[%s274] sm:$0xff] %vm355, 0.0
          %357 = vst.msk [vmem:[%s274 + $0x8] sm:$0xff] %vm355, 0.0
          %358 = vst.msk [vmem:[%s279] sm:$0xff] %vm355, 0.0
          %359 = vst.msk [vmem:[%s279 + $0x8] sm:$0xff] %vm355, 0.0
        $region36: #{_forward.7} parent=27 // pred_fallthru
          _
        %v360 = vld [vmem:[%s274] sm:$0xff]
        %v361 = vld [vmem:[%s274 + $0x8] sm:$0xff]
        %362 = vadd.xlane.f32.xlu0 %v343
        %v363 = vpop.xlane.xlu0 %362
        %364 = vadd.xlane.f32.xlu0 %v346
        %v365 = vpop.xlane.xlu0 %364
        %v366 = vadd.f32 %v360, %v363
        %v367 = vadd.f32 %v361, %v365
        %vm368 = vcmask 7168
        %369 = vst.msk [vmem:[%s274] sm:$0xff] %vm368, %v366
        %370 = vst.msk [vmem:[%s274 + $0x8] sm:$0xff] %vm368, %v367
        %v371 = vld [vmem:[%s279] sm:$0xff]
        %v372 = vld [vmem:[%s279 + $0x8] sm:$0xff]
        %v373 = vmul.f32 %v343, %v343
        %v374 = vmul.f32 %v346, %v346
        %375 = vadd.xlane.f32.xlu0 %v373
        %v376 = vpop.xlane.xlu0 %375
        %377 = vadd.xlane.f32.xlu0 %v374
        %v378 = vpop.xlane.xlu0 %377
        %v379 = vadd.f32 %v371, %v376
        %v380 = vadd.f32 %v372, %v378
        %381 = vst.msk [vmem:[%s279] sm:$0xff] %vm368, %v379
        %382 = vst.msk [vmem:[%s279 + $0x8] sm:$0xff] %vm368, %v380
        %p383 = scmp.lt.s32.totalorder %s23, 7
        %s384 = scalar_select %p383, %s23, 7
        %p385 = scmp.lt.s32.totalorder %s24, 0
        %s386 = scalar_select %p385, %s24, 0
        %s387 = smul.addr %s384, 2
        %s388 = sadd.s32 %s386, %s387
        %s389 = smul.addr %s388, 8
        %s390 = scalar_lea.vmem %s2, %s389
        %p391 = scmp.lt.s32.totalorder %s23, 7
        %s392 = scalar_select %p391, %s23, 7
        %s393 = smul.addr %s392, 2
        %s394 = smul.addr %s393, 8
        %s395 = scalar_lea.vmem %s3, %s394
        %p396 = scmp.lt.s32.totalorder %s23, 7
        %s397 = scalar_select %p396, %s23, 7
        %s398 = smul.addr %s397, 2
        %s399 = smul.addr %s398, 8
        %s400 = scalar_lea.vmem %s4, %s399
        // Predicated region
        $region37: #{_forward.7} parent=27 // pred_check
          %p401 = pneg %p103
        $region38: #{_forward.7} parent=27 // pred_check_branch
          %403 = sbr.rel (%p401) target = $region40
        $region39: #{_forward.7} parent=27 // pred_region
          _
        $region40: #{_forward.7} parent=27 // pred_fallthru
          _
        // Predicated region
        $region41: #{_forward.7} parent=27 // pred_check
          %p404 = pneg %p129
        $region42: #{_forward.7} parent=27 // pred_check_branch
          %406 = sbr.rel (%p404) target = $region44
        $region43: #{_forward.7} parent=27 // pred_region
          _
        $region44: #{_forward.7} parent=27 // pred_fallthru
          _
        // Predicated region
        $region45: #{_forward.7} parent=27 // pred_check
          %p407 = pneg %p155
        $region46: #{_forward.7} parent=27 // pred_check_branch
          %409 = sbr.rel (%p407) target = $region48
        $region47: #{_forward.7} parent=27 // pred_region
          _
        $region48: #{_forward.7} parent=27 // pred_fallthru
          _
      $region28: #{_forward.7} parent=5 // pred_fallthru
        _
      %p410 = scmp.le.s32.totalorder 2, %s14
      // Predicated region
      $region49: #{_forward.7} parent=5 // pred_check
        %p411 = pneg %p410
      $region50: #{_forward.7} parent=5 // pred_check_branch
        %413 = sbr.rel (%p411) target = $region52
      $region51: #{_forward.7} parent=5 // pred_region
        %s414 = ssub.s32 %s14, 2
        // Predicated region
        $region53: #{_forward.7} parent=51 // pred_check
          %p415 = pneg %p109
        $region54: #{_forward.7} parent=51 // pred_check_branch
          %417 = sbr.rel (%p415) target = $region56
        $region55: #{_forward.7} parent=51 // pred_region
          %p418 = scmp.lt.s32.totalorder %s25, 7
          %s419 = scalar_select %p418, %s25, 7
          %p420 = scmp.lt.s32.totalorder %s26, 0
          %s421 = scalar_select %p420, %s26, 0
          %s422 = smul.addr %s419, 2
          %s423 = sadd.s32 %s421, %s422
          %s424 = smul.addr %s423, 8
          %s425 = scalar_lea.vmem %s2, %s424
        $region56: #{_forward.7} parent=51 // pred_fallthru
          _
        // Predicated region
        $region57: #{_forward.7} parent=51 // pred_check
          %p426 = pneg %p135
        $region58: #{_forward.7} parent=51 // pred_check_branch
          %428 = sbr.rel (%p426) target = $region60
        $region59: #{_forward.7} parent=51 // pred_region
          %p429 = scmp.lt.s32.totalorder %s25, 7
          %s430 = scalar_select %p429, %s25, 7
          %s431 = smul.addr %s430, 2
          %s432 = smul.addr %s431, 8
          %s433 = scalar_lea.vmem %s3, %s432
        $region60: #{_forward.7} parent=51 // pred_fallthru
          _
        // Predicated region
        $region61: #{_forward.7} parent=51 // pred_check
          %p434 = pneg %p161
        $region62: #{_forward.7} parent=51 // pred_check_branch
          %436 = sbr.rel (%p434) target = $region64
        $region63: #{_forward.7} parent=51 // pred_region
          %p437 = scmp.lt.s32.totalorder %s25, 7
          %s438 = scalar_select %p437, %s25, 7
          %s439 = smul.addr %s438, 2
          %s440 = smul.addr %s439, 8
          %s441 = scalar_lea.vmem %s4, %s440
        $region64: #{_forward.7} parent=51 // pred_fallthru
          _
      $region52: #{_forward.7} parent=5 // pred_fallthru
        _
    $region6: #{_forward.7} parent=1 // loop_footer
      %s18 = sadd.s32 1, %s14
    $region7: #{_forward.7} parent=1 // loop_footer_branch
      %13 = sbr.rel target = $region3
    $region8: #{_forward.7} parent=1 // loop_exit
      _
    %442 = vsyncpa [#allocation3], 1
    %s443 = scalar_lea.sflag [#allocation3], 1
    %444 = vsyncpa %s443, 1

// kernel: _forward.9
$region0: #{_forward.9}
  #allocation0 [shape = 'u32[]', space=smem, size = 0x4, offset = 0x4, fixed_abs, tag = 'smem constant byte address 0x4 - core index']
  #allocation1 [shape = 'u32[144,128]{1,0:T(1,128)}', space=vmem, size = 0x12000, scoped, tag = 'internal scratch']
  %s0 = inlined_call_operand.vmem [shape: bf16[8,8,128], index: 0, kind: input, shape index: {}]
  %s1 = inlined_call_operand.vmem [shape: bf16[8,128,128], index: 1, kind: input, shape index: {}]
  %s2 = inlined_call_operand.vmem [shape: f32[8,8,128], index: 2, kind: output, shape index: {0}]
  %s3 = inlined_call_operand.vmem [shape: f32[8,8,1], index: 3, kind: output, shape index: {1}]
  %s4 = inlined_call_operand.vmem [shape: f32[8,8,1], index: 4, kind: output, shape index: {2}]
  %5 = xla_tuple %s2, %s3, %s4
  %s6 = sld [smem:[#allocation0]]
  $region61: #{_forward.9} parent=0
    _
  %s8 = ssub.s32 1, %s6
  %s9 = scalar_select 0, %s8, %s6
  loop: start=0, step=1, limit=10
  $region2: #{_forward.9} parent=0 // loop_pre_header
    _
  $region3: #{_forward.9} parent=0 // loop_header
    %s11 = sphi 0, %s15
    %p12 = scmp.ge.s32.totalorder %s11, 10
    %s18 = sphi 0, %s30
    %s19 = sphi 0, %s26
    %s20 = sphi 0, %s18
    %s21 = sphi 0, %s19
    %s22 = sphi 0, %s20
    %s23 = sphi 0, %s21
    %s33 = sphi 0, %s35
    %s36 = sphi 0, %s33
    %s37 = sphi 0, %s36
    %s53 = sphi 0, %s37
    %s61 = sphi 0, %s63
    %s64 = sphi 0, %s61
    %s65 = sphi 0, %s64
    %s81 = sphi 0, %s65
    %s89 = sphi 0, %s91
    %s92 = sphi 0, %s89
    %s93 = sphi 0, %s92
    %s109 = sphi 0, %s93
    %s115 = sphi 0, %s117
    %s118 = sphi 0, %s115
    %s119 = sphi 0, %s118
    %s135 = sphi 0, %s119
    %s141 = sphi 0, %s143
    %s144 = sphi 0, %s141
    %s145 = sphi 0, %s144
    %s161 = sphi 0, %s145
  $region4: #{_forward.9} parent=0 // loop_header_branch
    %14 = sbr.rel (%p12) target = $region8
  $region5: #{_forward.9} parent=0 // loop_body
    %s16 = ssub.s32 %s11, 1
    %s17 = ssub.s32 %s11, 2
    %s24 = sadd.s32 1, %s19
    %p25 = scmp.ge.s32.totalorder %s24, 1
    %s26 = scalar_select %p25, 0, %s24
    %s27 = sadd.s32 1, %s18
    %s28 = scalar_select %p25, %s27, %s18
    %p29 = scmp.ge.s32.totalorder %s28, 8
    %s30 = scalar_select %p29, 0, %s28
    %s31 = ssub.s32 %s18, %s30
    %p32 = scmp.eq.s32.totalorder %s31, 0
    %s34 = sadd.s32 %s33, 1
    %s35 = scalar_select %p32, %s33, %s34
    %p38 = pneg %p32
    %p39 = scmp.eq.s32.totalorder %s11, 7
    %p40 = por %p38, %p39
    %p41 = scmp.ne.s32.totalorder %s33, %s36
    %p42 = scmp.eq.s32.totalorder %s11, 0
    %p43 = por %p41, %p42
    %p44 = scmp.ne.s32.totalorder %s33, %s36
    %p45 = scmp.eq.s32.totalorder %s16, 7
    %p46 = por %p44, %p45
    %p47 = scmp.ne.s32.totalorder %s36, %s37
    %p48 = scmp.eq.s32.totalorder %s16, 0
    %p49 = por %p47, %p48
    %p50 = scmp.ne.s32.totalorder %s36, %s37
    %p51 = scmp.eq.s32.totalorder %s17, 7
    %p52 = por %p50, %p51
    %p54 = scmp.ne.s32.totalorder %s37, %s53
    %p55 = scmp.eq.s32.totalorder %s17, 0
    %p56 = por %p54, %p55
    %s57 = ssub.s32 %s18, %s30
    %s58 = ssub.s32 %s19, %s26
    %s59 = sor.u32 %s57, %s58
    %p60 = scmp.eq.s32.totalorder %s59, 0
    %s62 = sadd.s32 %s61, 1
    %s63 = scalar_select %p60, %s61, %s62
    %p66 = pneg %p60
    %p67 = scmp.eq.s32.totalorder %s11, 7
    %p68 = por %p66, %p67
    %p69 = scmp.ne.s32.totalorder %s61, %s64
    %p70 = scmp.eq.s32.totalorder %s11, 0
    %p71 = por %p69, %p70
    %p72 = scmp.ne.s32.totalorder %s61, %s64
    %p73 = scmp.eq.s32.totalorder %s16, 7
    %p74 = por %p72, %p73
    %p75 = scmp.ne.s32.totalorder %s64, %s65
    %p76 = scmp.eq.s32.totalorder %s16, 0
    %p77 = por %p75, %p76
    %p78 = scmp.ne.s32.totalorder %s64, %s65
    %p79 = scmp.eq.s32.totalorder %s17, 7
    %p80 = por %p78, %p79
    %p82 = scmp.ne.s32.totalorder %s65, %s81
    %p83 = scmp.eq.s32.totalorder %s17, 0
    %p84 = por %p82, %p83
    %s85 = ssub.s32 %s18, %s30
    %s86 = ssub.s32 %s19, %s26
    %s87 = sor.u32 %s85, %s86
    %p88 = scmp.eq.s32.totalorder %s87, 0
    %s90 = sadd.s32 %s89, 1
    %s91 = scalar_select %p88, %s89, %s90
    %p94 = pneg %p88
    %p95 = scmp.eq.s32.totalorder %s11, 7
    %p96 = por %p94, %p95
    %p97 = scmp.ne.s32.totalorder %s89, %s92
    %p98 = scmp.eq.s32.totalorder %s11, 0
    %p99 = por %p97, %p98
    %p100 = scmp.ne.s32.totalorder %s89, %s92
    %p101 = scmp.eq.s32.totalorder %s16, 7
    %p102 = por %p100, %p101
    %p103 = scmp.ne.s32.totalorder %s92, %s93
    %p104 = scmp.eq.s32.totalorder %s16, 0
    %p105 = por %p103, %p104
    %p106 = scmp.ne.s32.totalorder %s92, %s93
    %p107 = scmp.eq.s32.totalorder %s17, 7
    %p108 = por %p106, %p107
    %p110 = scmp.ne.s32.totalorder %s93, %s109
    %p111 = scmp.eq.s32.totalorder %s17, 0
    %p112 = por %p110, %p111
    %s113 = ssub.s32 %s18, %s30
    %p114 = scmp.eq.s32.totalorder %s113, 0
    %s116 = sadd.s32 %s115, 1
    %s117 = scalar_select %p114, %s115, %s116
    %p120 = pneg %p114
    %p121 = scmp.eq.s32.totalorder %s11, 7
    %p122 = por %p120, %p121
    %p123 = scmp.ne.s32.totalorder %s115, %s118
    %p124 = scmp.eq.s32.totalorder %s11, 0
    %p125 = por %p123, %p124
    %p126 = scmp.ne.s32.totalorder %s115, %s118
    %p127 = scmp.eq.s32.totalorder %s16, 7
    %p128 = por %p126, %p127
    %p129 = scmp.ne.s32.totalorder %s118, %s119
    %p130 = scmp.eq.s32.totalorder %s16, 0
    %p131 = por %p129, %p130
    %p132 = scmp.ne.s32.totalorder %s118, %s119
    %p133 = scmp.eq.s32.totalorder %s17, 7
    %p134 = por %p132, %p133
    %p136 = scmp.ne.s32.totalorder %s119, %s135
    %p137 = scmp.eq.s32.totalorder %s17, 0
    %p138 = por %p136, %p137
    %s139 = ssub.s32 %s18, %s30
    %p140 = scmp.eq.s32.totalorder %s139, 0
    %s142 = sadd.s32 %s141, 1
    %s143 = scalar_select %p140, %s141, %s142
    %p146 = pneg %p140
    %p147 = scmp.eq.s32.totalorder %s11, 7
    %p148 = por %p146, %p147
    %p149 = scmp.ne.s32.totalorder %s141, %s144
    %p150 = scmp.eq.s32.totalorder %s11, 0
    %p151 = por %p149, %p150
    %p152 = scmp.ne.s32.totalorder %s141, %s144
    %p153 = scmp.eq.s32.totalorder %s16, 7
    %p154 = por %p152, %p153
    %p155 = scmp.ne.s32.totalorder %s144, %s145
    %p156 = scmp.eq.s32.totalorder %s16, 0
    %p157 = por %p155, %p156
    %p158 = scmp.ne.s32.totalorder %s144, %s145
    %p159 = scmp.eq.s32.totalorder %s17, 7
    %p160 = por %p158, %p159
    %p162 = scmp.ne.s32.totalorder %s145, %s161
    %p163 = scmp.eq.s32.totalorder %s17, 0
    %p164 = por %p162, %p163
    %p165 = scmp.le.s32.totalorder 1, %s11
    %p166 = scmp.lt.s32.totalorder %s11, 9
    %p167 = pnand %p165, %p166
    %p168 = pneg %p167
    // Predicated region
    $region9: #{_forward.9} parent=5 // pred_check
      _
    $region10: #{_forward.9} parent=5 // pred_check_branch
      %170 = sbr.rel (%p167) target = $region12
    $region11: #{_forward.9} parent=5 // pred_region
      %s171 = ssub.s32 %s11, 1
    $region12: #{_forward.9} parent=5 // pred_fallthru
      _
    %p172 = scmp.lt.s32.totalorder %s11, 8
    // Predicated region
    $region13: #{_forward.9} parent=5 // pred_check
      %p173 = pneg %p172
    $region14: #{_forward.9} parent=5 // pred_check_branch
      %175 = sbr.rel (%p173) target = $region16
    $region15: #{_forward.9} parent=5 // pred_region
      // Predicated region
      $region17: #{_forward.9} parent=15 // pred_check
        %p176 = pneg %p43
      $region18: #{_forward.9} parent=15 // pred_check_branch
        %178 = sbr.rel (%p176) target = $region20
      $region19: #{_forward.9} parent=15 // pred_region
        %p179 = scmp.lt.s32.totalorder %s18, 7
        %s180 = scalar_select %p179, %s18, 7
        %s181 = smul.addr %s180, 4
        %s182 = scalar_lea.vmem %s0, %s181
      $region20: #{_forward.9} parent=15 // pred_fallthru
        _
      // Predicated region
      $region21: #{_forward.9} parent=15 // pred_check
        %p183 = pneg %p71
      $region22: #{_forward.9} parent=15 // pred_check_branch
        %185 = sbr.rel (%p183) target = $region24
      $region23: #{_forward.9} parent=15 // pred_region
        %p186 = scmp.lt.s32.totalorder %s18, 7
        %s187 = scalar_select %p186, %s18, 7
        %p188 = scmp.lt.s32.totalorder %s19, 0
        %s189 = scalar_select %p188, %s19, 0
        %s190 = smul.addr %s187, 16
        %s191 = sadd.s32 %s189, %s190
        %s192 = smul.addr %s191, 4
        %s193 = scalar_lea.vmem %s1, %s192
      $region24: #{_forward.9} parent=15 // pred_fallthru
        _
    $region16: #{_forward.9} parent=5 // pred_fallthru
      _
    %p194 = scmp.le.s32.totalorder 1, %s11
    %p195 = scmp.lt.s32.totalorder %s11, 9
    %p196 = pnand %p194, %p195
    %p197 = pneg %p196
    // Predicated region
    $region25: #{_forward.9} parent=5 // pred_check
      _
    $region26: #{_forward.9} parent=5 // pred_check_branch
      %199 = sbr.rel (%p196) target = $region28
    $region27: #{_forward.9} parent=5 // pred_region
      %s200 = ssub.s32 %s11, 1
      %p201 = scmp.lt.s32.totalorder %s20, 7
      %s202 = scalar_select %p201, %s20, 7
      %s203 = smul.addr %s202, 4
      %s204 = scalar_lea.vmem %s0, %s203
      %p205 = pneg %p49
      %p206 = pneg %p46
      %p207 = scmp.lt.s32.totalorder %s20, 7
      %s208 = scalar_select %p207, %s20, 7
      %p209 = scmp.lt.s32.totalorder %s21, 0
      %s210 = scalar_select %p209, %s21, 0
      %s211 = smul.addr %s208, 16
      %s212 = sadd.s32 %s210, %s211
      %s213 = smul.addr %s212, 4
      %s214 = scalar_lea.vmem %s1, %s213
      %p215 = pneg %p77
      %p216 = pneg %p74
      %p217 = pneg %p105
      %p218 = pneg %p102
      %p219 = scmp.lt.s32.totalorder %s20, 7
      %s220 = scalar_select %p219, %s20, 7
      %p221 = scmp.lt.s32.totalorder %s21, 0
      %s222 = scalar_select %p221, %s21, 0
      %s223 = sadd.s32 %s222, %s220
      %s224 = smul.addr %s223, 8
      %s225 = scalar_lea.vmem %s2, %s224
      %p226 = pneg %p131
      %p227 = pneg %p128
      %p228 = scmp.lt.s32.totalorder %s20, 7
      %s229 = scalar_select %p228, %s20, 7
      %s230 = smul.addr %s229, 8
      %s231 = scalar_lea.vmem %s3, %s230
      %p232 = pneg %p157
      %p233 = pneg %p154
      %p234 = scmp.lt.s32.totalorder %s20, 7
      %s235 = scalar_select %p234, %s20, 7
      %s236 = smul.addr %s235, 8
      %s237 = scalar_lea.vmem %s4, %s236
      %p238 = scmp.lt.s32.totalorder %s20, 7
      %s239 = scalar_select %p238, %s20, 7
      %s240 = smul.addr %s239, 4
      %s241 = scalar_lea.vmem %s0, %s240
      %p242 = scmp.lt.s32.totalorder %s20, 7
      %s243 = scalar_select %p242, %s20, 7
      %p244 = scmp.lt.s32.totalorder %s21, 0
      %s245 = scalar_select %p244, %s21, 0
      %s246 = smul.addr %s243, 16
      %s247 = sadd.s32 %s245, %s246
      %s248 = smul.addr %s247, 4
      %s249 = scalar_lea.vmem %s1, %s248
      %p250 = scmp.lt.s32.totalorder %s20, 7
      %s251 = scalar_select %p250, %s20, 7
      %p252 = scmp.lt.s32.totalorder %s21, 0
      %s253 = scalar_select %p252, %s21, 0
      %s254 = sadd.s32 %s253, %s251
      %s255 = smul.addr %s254, 8
      %s256 = scalar_lea.vmem %s2, %s255
      %p257 = scmp.lt.s32.totalorder %s20, 7
      %s258 = scalar_select %p257, %s20, 7
      %s259 = smul.addr %s258, 8
      %s260 = scalar_lea.vmem %s3, %s259
      %p261 = scmp.lt.s32.totalorder %s20, 7
      %s262 = scalar_select %p261, %s20, 7
      %s263 = smul.addr %s262, 8
      %s264 = scalar_lea.vmem %s4, %s263
      %v266 = vld [vmem:[%s241] sm:$0xf]
      %v267 = vld [vmem:[%s249] sm:$0xf]
      %v268 = vld [vmem:[%s249 + $0x4] sm:$0xf]
      %v269 = vld [vmem:[%s249 + $0x8] sm:$0xf]
      %v270 = vld [vmem:[%s249 + $0xc] sm:$0xf]
      %v271 = vld [vmem:[%s249 + $0x10] sm:$0xf]
      %v272 = vld [vmem:[%s249 + $0x14] sm:$0xf]
      %v273 = vld [vmem:[%s249 + $0x18] sm:$0xf]
      %v274 = vld [vmem:[%s249 + $0x1c] sm:$0xf]
      %v275 = vld [vmem:[%s249 + $0x20] sm:$0xf]
      %v276 = vld [vmem:[%s249 + $0x24] sm:$0xf]
      %v277 = vld [vmem:[%s249 + $0x28] sm:$0xf]
      %v278 = vld [vmem:[%s249 + $0x2c] sm:$0xf]
      %v279 = vld [vmem:[%s249 + $0x30] sm:$0xf]
      %v280 = vld [vmem:[%s249 + $0x34] sm:$0xf]
      %v281 = vld [vmem:[%s249 + $0x38] sm:$0xf]
      %v282 = vld [vmem:[%s249 + $0x3c] sm:$0xf]
      %v299 = vunpack.c.l.b16 %v267
      %v300 = vunpack.c.l.b16 %v268
      %v301 = vunpack.c.l.b16 %v269
      %v302 = vunpack.c.l.b16 %v270
      %v303 = vunpack.c.l.b16 %v271
      %v304 = vunpack.c.l.b16 %v272
      %v305 = vunpack.c.l.b16 %v273
      %v306 = vunpack.c.l.b16 %v274
      %v307 = vunpack.c.l.b16 %v275
      %v308 = vunpack.c.l.b16 %v276
      %v309 = vunpack.c.l.b16 %v277
      %v310 = vunpack.c.l.b16 %v278
      %v311 = vunpack.c.l.b16 %v279
      %v312 = vunpack.c.l.b16 %v280
      %v313 = vunpack.c.l.b16 %v281
      %v314 = vunpack.c.l.b16 %v282
      %v315 = vpack.c.b16 %v300, %v299
      %v316 = vpack.c.b16 %v302, %v301
      %v317 = vpack.c.b16 %v304, %v303
      %v318 = vpack.c.b16 %v306, %v305
      %v319 = vpack.c.b16 %v308, %v307
      %v320 = vpack.c.b16 %v310, %v309
      %v321 = vpack.c.b16 %v312, %v311
      %v322 = vpack.c.b16 %v314, %v313
      %331 = vmatprep.subr.bf16.mxu0 0
      %332 = vmatpush1.bf16.msra.mxu0 %v322
      %333 = vmatprep.subr.bf16.mxu0 0
      %334 = vmatpush1.bf16.msra.mxu0 %v321
      %335 = vmatprep.subr.bf16.mxu0 0
      %336 = vmatpush1.bf16.msra.mxu0 %v320
      %337 = vmatprep.subr.bf16.mxu0 0
      %338 = vmatpush1.bf16.msra.mxu0 %v319
      %339 = vmatprep.subr.bf16.mxu0 0
      %340 = vmatpush1.bf16.msra.mxu0 %v318
      %341 = vmatprep.subr.bf16.mxu0 0
      %342 = vmatpush1.bf16.msra.mxu0 %v317
      %343 = vmatprep.subr.bf16.mxu0 0
      %344 = vmatpush1.bf16.msra.mxu0 %v316
      %345 = vmatprep.subr.bf16.mxu0 0
      %346 = vmatpush1.bf16.msra.mxu0 %v315
      %347 = vmatprep.subr.bf16.mxu0 0
      %348 = vmatpush2.bf16.msra.mxu0 0
      %349 = vmatprep.subr.bf16.mxu0 0
      %350 = vmatpush2.bf16.msra.mxu0 0
      %351 = vmatprep.subr.bf16.mxu0 0
      %352 = vmatpush2.bf16.msra.mxu0 0
      %353 = vmatprep.subr.bf16.mxu0 0
      %354 = vmatpush2.bf16.msra.mxu0 0
      %355 = vmatprep.subr.bf16.mxu0 0
      %356 = vmatpush2.bf16.msra.mxu0 0
      %357 = vmatprep.subr.bf16.mxu0 0
      %358 = vmatpush2.bf16.msra.mxu0 0
      %359 = vmatprep.subr.bf16.mxu0 0
      %360 = vmatpush2.bf16.msra.mxu0 0
      %361 = vmatprep.subr.bf16.mxu0 0
      %362 = vmatpush2.bf16.msra.mxu0 0
      %363 = vmatprep.mubr.bf16.mxu0 0
      %364 = vmatmul.mubr.bf16.gmra.mxu0 %v266
      %v365 = vpop.f32.mrf.mxu0
      %v366 = vadd.f32 0.0, %v365
      %v367 = vpop.f32.mrf.mxu0
      %v368 = vpop.f32.mrf.mxu0
      %v369 = vpop.f32.mrf.mxu0
      %370 = vdwg.mxu0
      %371 = vst [vmem:[%s256] sm:$0xff] %v366
      %p372 = scmp.eq.s32.totalorder %s21, 0
      // Predicated region
      $region29: #{_forward.9} parent=27 // pred_check
        %p373 = pneg %p372
      $region30: #{_forward.9} parent=27 // pred_check_branch
        %375 = sbr.rel (%p373) target = $region32
      $region31: #{_forward.9} parent=27 // pred_region
        %vm376 = vcmask 7168
        %377 = vst.msk [vmem:[%s260] sm:$0xff] %vm376, 0.0
        %378 = vst.msk [vmem:[%s264] sm:$0xff] %vm376, 0.0
      $region32: #{_forward.9} parent=27 // pred_fallthru
        _
      %v379 = vld [vmem:[%s260] sm:$0xff]
      %380 = vadd.xlane.f32.xlu0 %v366
      %v381 = vpop.xlane.xlu0 %380
      %v382 = vadd.f32 %v379, %v381
      %vm383 = vcmask 7168
      %384 = vst.msk [vmem:[%s260] sm:$0xff] %vm383, %v382
      %v385 = vld [vmem:[%s264] sm:$0xff]
      %v386 = vmul.f32 %v366, %v366
      %387 = vadd.xlane.f32.xlu0 %v386
      %v388 = vpop.xlane.xlu0 %387
      %v389 = vadd.f32 %v385, %v388
      %390 = vst.msk [vmem:[%s264] sm:$0xff] %vm383, %v389
      %p391 = scmp.lt.s32.totalorder %s20, 7
      %s392 = scalar_select %p391, %s20, 7
      %p393 = scmp.lt.s32.totalorder %s21, 0
      %s394 = scalar_select %p393, %s21, 0
      %s395 = sadd.s32 %s394, %s392
      %s396 = smul.addr %s395, 8
      %s397 = scalar_lea.vmem %s2, %s396
      %p398 = scmp.lt.s32.totalorder %s20, 7
      %s399 = scalar_select %p398, %s20, 7
      %s400 = smul.addr %s399, 8
      %s401 = scalar_lea.vmem %s3, %s400
      %p402 = scmp.lt.s32.totalorder %s20, 7
      %s403 = scalar_select %p402, %s20, 7
      %s404 = smul.addr %s403, 8
      %s405 = scalar_lea.vmem %s4, %s404
      // Predicated region
      $region33: #{_forward.9} parent=27 // pred_check
        %p406 = pneg %p102
      $region34: #{_forward.9} parent=27 // pred_check_branch
        %408 = sbr.rel (%p406) target = $region36
      $region35: #{_forward.9} parent=27 // pred_region
        _
      $region36: #{_forward.9} parent=27 // pred_fallthru
        _
      // Predicated region
      $region37: #{_forward.9} parent=27 // pred_check
        %p409 = pneg %p128
      $region38: #{_forward.9} parent=27 // pred_check_branch
        %411 = sbr.rel (%p409) target = $region40
      $region39: #{_forward.9} parent=27 // pred_region
        _
      $region40: #{_forward.9} parent=27 // pred_fallthru
        _
      // Predicated region
      $region41: #{_forward.9} parent=27 // pred_check
        %p412 = pneg %p154
      $region42: #{_forward.9} parent=27 // pred_check_branch
        %414 = sbr.rel (%p412) target = $region44
      $region43: #{_forward.9} parent=27 // pred_region
        _
      $region44: #{_forward.9} parent=27 // pred_fallthru
        _
    $region28: #{_forward.9} parent=5 // pred_fallthru
      _
    %p415 = scmp.le.s32.totalorder 2, %s11
    // Predicated region
    $region45: #{_forward.9} parent=5 // pred_check
      %p416 = pneg %p415
    $region46: #{_forward.9} parent=5 // pred_check_branch
      %418 = sbr.rel (%p416) target = $region48
    $region47: #{_forward.9} parent=5 // pred_region
      %s419 = ssub.s32 %s11, 2
      // Predicated region
      $region49: #{_forward.9} parent=47 // pred_check
        %p420 = pneg %p108
      $region50: #{_forward.9} parent=47 // pred_check_branch
        %422 = sbr.rel (%p420) target = $region52
      $region51: #{_forward.9} parent=47 // pred_region
        %p423 = scmp.lt.s32.totalorder %s22, 7
        %s424 = scalar_select %p423, %s22, 7
        %p425 = scmp.lt.s32.totalorder %s23, 0
        %s426 = scalar_select %p425, %s23, 0
        %s427 = sadd.s32 %s426, %s424
        %s428 = smul.addr %s427, 8
        %s429 = scalar_lea.vmem %s2, %s428
      $region52: #{_forward.9} parent=47 // pred_fallthru
        _
      // Predicated region
      $region53: #{_forward.9} parent=47 // pred_check
        %p430 = pneg %p134
      $region54: #{_forward.9} parent=47 // pred_check_branch
        %432 = sbr.rel (%p430) target = $region56
      $region55: #{_forward.9} parent=47 // pred_region
        %p433 = scmp.lt.s32.totalorder %s22, 7
        %s434 = scalar_select %p433, %s22, 7
        %s435 = smul.addr %s434, 8
        %s436 = scalar_lea.vmem %s3, %s435
      $region56: #{_forward.9} parent=47 // pred_fallthru
        _
      // Predicated region
      $region57: #{_forward.9} parent=47 // pred_check
        %p437 = pneg %p160
      $region58: #{_forward.9} parent=47 // pred_check_branch
        %439 = sbr.rel (%p437) target = $region60
      $region59: #{_forward.9} parent=47 // pred_region
        %p440 = scmp.lt.s32.totalorder %s22, 7
        %s441 = scalar_select %p440, %s22, 7
        %s442 = smul.addr %s441, 8
        %s443 = scalar_lea.vmem %s4, %s442
      $region60: #{_forward.9} parent=47 // pred_fallthru
        _
    $region48: #{_forward.9} parent=5 // pred_fallthru
      _
  $region6: #{_forward.9} parent=0 // loop_footer
    %s15 = sadd.s32 1, %s11
  $region7: #{_forward.9} parent=0 // loop_footer_branch
    %10 = sbr.rel target = $region3
  $region8: #{_forward.9} parent=0 // loop_exit
    _

// kernel: _forward.10
$region0: #{_forward.10}
  #allocation0 [shape = 'u32[]', space=smem, size = 0x4, offset = 0x4, fixed_abs, tag = 'smem constant byte address 0x4 - core index']
  #allocation1 [shape = 'u32[144,128]{1,0:T(1,128)}', space=vmem, size = 0x12000, scoped, tag = 'internal scratch']
  %s0 = inlined_call_operand.vmem [shape: f32[8,8,128], index: 0, kind: input, shape index: {}]
  %s1 = inlined_call_operand.vmem [shape: f32[8,1], index: 1, kind: input, shape index: {}]
  %s2 = inlined_call_operand.vmem [shape: f32[8,1], index: 2, kind: input, shape index: {}]
  %s3 = inlined_call_operand.vmem [shape: bf16[8,8,128], index: 3, kind: output, shape index: {}]
  %s4 = sld [smem:[#allocation0]]
  $region45: #{_forward.10} parent=0
    _
  %s6 = ssub.s32 1, %s4
  %s7 = scalar_select 0, %s6, %s4
  loop: start=0, step=1, limit=10
  $region2: #{_forward.10} parent=0 // loop_pre_header
    _
  $region3: #{_forward.10} parent=0 // loop_header
    %s9 = sphi 0, %s13
    %p10 = scmp.ge.s32.totalorder %s9, 10
    %s16 = sphi 0, %s28
    %s17 = sphi 0, %s24
    %s18 = sphi 0, %s16
    %s19 = sphi 0, %s17
    %s20 = sphi 0, %s18
    %s21 = sphi 0, %s19
    %s33 = sphi 0, %s35
    %s36 = sphi 0, %s33
    %s37 = sphi 0, %s36
    %s53 = sphi 0, %s37
    %s57 = sphi 0, %s57
    %s59 = sphi 0, %s57
    %s60 = sphi 0, %s59
    %s74 = sphi 0, %s60
    %s78 = sphi 0, %s78
    %s80 = sphi 0, %s78
    %s81 = sphi 0, %s80
    %s95 = sphi 0, %s81
    %s103 = sphi 0, %s105
    %s106 = sphi 0, %s103
    %s107 = sphi 0, %s106
    %s123 = sphi 0, %s107
  $region4: #{_forward.10} parent=0 // loop_header_branch
    %12 = sbr.rel (%p10) target = $region8
  $region5: #{_forward.10} parent=0 // loop_body
    %s14 = ssub.s32 %s9, 1
    %s15 = ssub.s32 %s9, 2
    %s22 = sadd.s32 1, %s17
    %p23 = scmp.ge.s32.totalorder %s22, 1
    %s24 = scalar_select %p23, 0, %s22
    %s25 = sadd.s32 1, %s16
    %s26 = scalar_select %p23, %s25, %s16
    %p27 = scmp.ge.s32.totalorder %s26, 8
    %s28 = scalar_select %p27, 0, %s26
    %s29 = ssub.s32 %s16, %s28
    %s30 = ssub.s32 %s17, %s24
    %s31 = sor.u32 %s29, %s30
    %p32 = scmp.eq.s32.totalorder %s31, 0
    %s34 = sadd.s32 %s33, 1
    %s35 = scalar_select %p32, %s33, %s34
    %p38 = pneg %p32
    %p39 = scmp.eq.s32.totalorder %s9, 7
    %p40 = por %p38, %p39
    %p41 = scmp.ne.s32.totalorder %s33, %s36
    %p42 = scmp.eq.s32.totalorder %s9, 0
    %p43 = por %p41, %p42
    %p44 = scmp.ne.s32.totalorder %s33, %s36
    %p45 = scmp.eq.s32.totalorder %s14, 7
    %p46 = por %p44, %p45
    %p47 = scmp.ne.s32.totalorder %s36, %s37
    %p48 = scmp.eq.s32.totalorder %s14, 0
    %p49 = por %p47, %p48
    %p50 = scmp.ne.s32.totalorder %s36, %s37
    %p51 = scmp.eq.s32.totalorder %s15, 7
    %p52 = por %p50, %p51
    %p54 = scmp.ne.s32.totalorder %s37, %s53
    %p55 = scmp.eq.s32.totalorder %s15, 0
    %p56 = por %p54, %p55
    %s58 = sadd.s32 %s57, 1
    %p61 = scmp.eq.s32.totalorder %s9, 7
    %p62 = scmp.ne.s32.totalorder %s57, %s59
    %p63 = scmp.eq.s32.totalorder %s9, 0
    %p64 = por %p62, %p63
    %p65 = scmp.ne.s32.totalorder %s57, %s59
    %p66 = scmp.eq.s32.totalorder %s14, 7
    %p67 = por %p65, %p66
    %p68 = scmp.ne.s32.totalorder %s59, %s60
    %p69 = scmp.eq.s32.totalorder %s14, 0
    %p70 = por %p68, %p69
    %p71 = scmp.ne.s32.totalorder %s59, %s60
    %p72 = scmp.eq.s32.totalorder %s15, 7
    %p73 = por %p71, %p72
    %p75 = scmp.ne.s32.totalorder %s60, %s74
    %p76 = scmp.eq.s32.totalorder %s15, 0
    %p77 = por %p75, %p76
    %s79 = sadd.s32 %s78, 1
    %p82 = scmp.eq.s32.totalorder %s9, 7
    %p83 = scmp.ne.s32.totalorder %s78, %s80
    %p84 = scmp.eq.s32.totalorder %s9, 0
    %p85 = por %p83, %p84
    %p86 = scmp.ne.s32.totalorder %s78, %s80
    %p87 = scmp.eq.s32.totalorder %s14, 7
    %p88 = por %p86, %p87
    %p89 = scmp.ne.s32.totalorder %s80, %s81
    %p90 = scmp.eq.s32.totalorder %s14, 0
    %p91 = por %p89, %p90
    %p92 = scmp.ne.s32.totalorder %s80, %s81
    %p93 = scmp.eq.s32.totalorder %s15, 7
    %p94 = por %p92, %p93
    %p96 = scmp.ne.s32.totalorder %s81, %s95
    %p97 = scmp.eq.s32.totalorder %s15, 0
    %p98 = por %p96, %p97
    %s99 = ssub.s32 %s16, %s28
    %s100 = ssub.s32 %s17, %s24
    %s101 = sor.u32 %s99, %s100
    %p102 = scmp.eq.s32.totalorder %s101, 0
    %s104 = sadd.s32 %s103, 1
    %s105 = scalar_select %p102, %s103, %s104
    %p108 = pneg %p102
    %p109 = scmp.eq.s32.totalorder %s9, 7
    %p110 = por %p108, %p109
    %p111 = scmp.ne.s32.totalorder %s103, %s106
    %p112 = scmp.eq.s32.totalorder %s9, 0
    %p113 = por %p111, %p112
    %p114 = scmp.ne.s32.totalorder %s103, %s106
    %p115 = scmp.eq.s32.totalorder %s14, 7
    %p116 = por %p114, %p115
    %p117 = scmp.ne.s32.totalorder %s106, %s107
    %p118 = scmp.eq.s32.totalorder %s14, 0
    %p119 = por %p117, %p118
    %p120 = scmp.ne.s32.totalorder %s106, %s107
    %p121 = scmp.eq.s32.totalorder %s15, 7
    %p122 = por %p120, %p121
    %p124 = scmp.ne.s32.totalorder %s107, %s123
    %p125 = scmp.eq.s32.totalorder %s15, 0
    %p126 = por %p124, %p125
    %p127 = scmp.le.s32.totalorder 1, %s9
    %p128 = scmp.lt.s32.totalorder %s9, 9
    %p129 = pnand %p127, %p128
    %p130 = pneg %p129
    // Predicated region
    $region9: #{_forward.10} parent=5 // pred_check
      _
    $region10: #{_forward.10} parent=5 // pred_check_branch
      %132 = sbr.rel (%p129) target = $region12
    $region11: #{_forward.10} parent=5 // pred_region
      %s133 = ssub.s32 %s9, 1
      // Predicated region
      $region13: #{_forward.10} parent=11 // pred_check
        %p134 = pneg %p70
      $region14: #{_forward.10} parent=11 // pred_check_branch
        %136 = sbr.rel (%p134) target = $region16
      $region15: #{_forward.10} parent=11 // pred_region
        _
      $region16: #{_forward.10} parent=11 // pred_fallthru
        _
      // Predicated region
      $region17: #{_forward.10} parent=11 // pred_check
        %p137 = pneg %p91
      $region18: #{_forward.10} parent=11 // pred_check_branch
        %139 = sbr.rel (%p137) target = $region20
      $region19: #{_forward.10} parent=11 // pred_region
        _
      $region20: #{_forward.10} parent=11 // pred_fallthru
        _
    $region12: #{_forward.10} parent=5 // pred_fallthru
      _
    %p140 = scmp.lt.s32.totalorder %s9, 8
    // Predicated region
    $region21: #{_forward.10} parent=5 // pred_check
      %p141 = pneg %p140
    $region22: #{_forward.10} parent=5 // pred_check_branch
      %143 = sbr.rel (%p141) target = $region24
    $region23: #{_forward.10} parent=5 // pred_region
      // Predicated region
      $region25: #{_forward.10} parent=23 // pred_check
        %p144 = pneg %p43
      $region26: #{_forward.10} parent=23 // pred_check_branch
        %146 = sbr.rel (%p144) target = $region28
      $region27: #{_forward.10} parent=23 // pred_region
        %p147 = scmp.lt.s32.totalorder %s16, 7
        %s148 = scalar_select %p147, %s16, 7
        %p149 = scmp.lt.s32.totalorder %s17, 0
        %s150 = scalar_select %p149, %s17, 0
        %s151 = sadd.s32 %s150, %s148
        %s152 = smul.addr %s151, 8
        %s153 = scalar_lea.vmem %s0, %s152
      $region28: #{_forward.10} parent=23 // pred_fallthru
        _
    $region24: #{_forward.10} parent=5 // pred_fallthru
      _
    %p154 = scmp.le.s32.totalorder 1, %s9
    %p155 = scmp.lt.s32.totalorder %s9, 9
    %p156 = pnand %p154, %p155
    %p157 = pneg %p156
    // Predicated region
    $region29: #{_forward.10} parent=5 // pred_check
      _
    $region30: #{_forward.10} parent=5 // pred_check_branch
      %159 = sbr.rel (%p156) target = $region32
    $region31: #{_forward.10} parent=5 // pred_region
      %s160 = ssub.s32 %s9, 1
      %p161 = scmp.lt.s32.totalorder %s18, 7
      %s162 = scalar_select %p161, %s18, 7
      %p163 = scmp.lt.s32.totalorder %s19, 0
      %s164 = scalar_select %p163, %s19, 0
      %s165 = sadd.s32 %s164, %s162
      %s166 = smul.addr %s165, 8
      %s167 = scalar_lea.vmem %s0, %s166
      %p168 = pneg %p49
      %p169 = pneg %p46
      %p170 = pneg %p70
      %p171 = pneg %p67
      %p172 = pneg %p91
      %p173 = pneg %p88
      %p174 = pneg %p119
      %p175 = pneg %p116
      %p176 = scmp.lt.s32.totalorder %s18, 7
      %s177 = scalar_select %p176, %s18, 7
      %p178 = scmp.lt.s32.totalorder %s19, 0
      %s179 = scalar_select %p178, %s19, 0
      %s180 = sadd.s32 %s179, %s177
      %s181 = smul.addr %s180, 4
      %s182 = scalar_lea.vmem %s3, %s181
      %p183 = scmp.lt.s32.totalorder %s18, 7
      %s184 = scalar_select %p183, %s18, 7
      %p185 = scmp.lt.s32.totalorder %s19, 0
      %s186 = scalar_select %p185, %s19, 0
      %s187 = sadd.s32 %s186, %s184
      %s188 = smul.addr %s187, 8
      %s189 = scalar_lea.vmem %s0, %s188
      %p190 = scmp.lt.s32.totalorder %s18, 7
      %s191 = scalar_select %p190, %s18, 7
      %p192 = scmp.lt.s32.totalorder %s19, 0
      %s193 = scalar_select %p192, %s19, 0
      %s194 = sadd.s32 %s193, %s191
      %s195 = smul.addr %s194, 4
      %s196 = scalar_lea.vmem %s3, %s195
      %v197 = vld [vmem:[%s189] sm:$0xff]
      %v198 = vld [vmem:[%s1] sm:$0xff]
      %200 = vset.pattern.permute.xlu0 0
      %201 = vperm.xlu0 %200, %v198
      %v202 = vpop.permute.xlu0 %201
      %v204 = vmul.f32 %v197, %v202
      %v205 = vld [vmem:[%s2] sm:$0xff]
      %207 = vset.pattern.permute.xlu0 0
      %208 = vperm.xlu0 %207, %v205
      %v209 = vpop.permute.xlu0 %208
      %v211 = vadd.f32 %v204, %v209
      %v212 = vmax.f32 %v211, 0.0
      %v213 = vpack.c.bf16 %v212, %v212
      %214 = vst [vmem:[%s196] sm:$0xf] %v213
      %p215 = scmp.lt.s32.totalorder %s18, 7
      %s216 = scalar_select %p215, %s18, 7
      %p217 = scmp.lt.s32.totalorder %s19, 0
      %s218 = scalar_select %p217, %s19, 0
      %s219 = sadd.s32 %s218, %s216
      %s220 = smul.addr %s219, 4
      %s221 = scalar_lea.vmem %s3, %s220
      // Predicated region
      $region33: #{_forward.10} parent=31 // pred_check
        %p222 = pneg %p116
      $region34: #{_forward.10} parent=31 // pred_check_branch
        %224 = sbr.rel (%p222) target = $region36
      $region35: #{_forward.10} parent=31 // pred_region
        _
      $region36: #{_forward.10} parent=31 // pred_fallthru
        _
    $region32: #{_forward.10} parent=5 // pred_fallthru
      _
    %p225 = scmp.le.s32.totalorder 2, %s9
    // Predicated region
    $region37: #{_forward.10} parent=5 // pred_check
      %p226 = pneg %p225
    $region38: #{_forward.10} parent=5 // pred_check_branch
      %228 = sbr.rel (%p226) target = $region40
    $region39: #{_forward.10} parent=5 // pred_region
      %s229 = ssub.s32 %s9, 2
      // Predicated region
      $region41: #{_forward.10} parent=39 // pred_check
        %p230 = pneg %p122
      $region42: #{_forward.10} parent=39 // pred_check_branch
        %232 = sbr.rel (%p230) target = $region44
      $region43: #{_forward.10} parent=39 // pred_region
        %p233 = scmp.lt.s32.totalorder %s20, 7
        %s234 = scalar_select %p233, %s20, 7
        %p235 = scmp.lt.s32.totalorder %s21, 0
        %s236 = scalar_select %p235, %s21, 0
        %s237 = sadd.s32 %s236, %s234
        %s238 = smul.addr %s237, 4
        %s239 = scalar_lea.vmem %s3, %s238
      $region44: #{_forward.10} parent=39 // pred_fallthru
        _
    $region40: #{_forward.10} parent=5 // pred_fallthru
      _
  $region6: #{_forward.10} parent=0 // loop_footer
    %s13 = sadd.s32 1, %s9
  $region7: #{_forward.10} parent=0 // loop_footer_branch
    %8 = sbr.rel target = $region3
  $region8: #{_forward.10} parent=0 // loop_exit
    _

// kernel: _forward.11
$region0: #{_forward.11}
  #allocation0 [shape = 'u32[]', space=smem, size = 0x4, offset = 0x4, fixed_abs, tag = 'smem constant byte address 0x4 - core index']
  #allocation1 [shape = 'u32[144,128]{1,0:T(1,128)}', space=vmem, size = 0x12000, scoped, tag = 'internal scratch']
  %s0 = inlined_call_operand.vmem [shape: bf16[8,8,64], index: 0, kind: input, shape index: {}]
  %s1 = inlined_call_operand.vmem [shape: bf16[8,64,128], index: 1, kind: input, shape index: {}]
  %s2 = inlined_call_operand.vmem [shape: f32[8,8,128], index: 2, kind: output, shape index: {0}]
  %s3 = inlined_call_operand.vmem [shape: f32[8,8,1], index: 3, kind: output, shape index: {1}]
  %s4 = inlined_call_operand.vmem [shape: f32[8,8,1], index: 4, kind: output, shape index: {2}]
  %5 = xla_tuple %s2, %s3, %s4
  %s6 = sld [smem:[#allocation0]]
  $region61: #{_forward.11} parent=0
    _
  %s8 = ssub.s32 1, %s6
  %s9 = scalar_select 0, %s8, %s6
  loop: start=0, step=1, limit=10
  $region2: #{_forward.11} parent=0 // loop_pre_header
    _
  $region3: #{_forward.11} parent=0 // loop_header
    %s11 = sphi 0, %s15
    %p12 = scmp.ge.s32.totalorder %s11, 10
    %s18 = sphi 0, %s30
    %s19 = sphi 0, %s26
    %s20 = sphi 0, %s18
    %s21 = sphi 0, %s19
    %s22 = sphi 0, %s20
    %s23 = sphi 0, %s21
    %s33 = sphi 0, %s35
    %s36 = sphi 0, %s33
    %s37 = sphi 0, %s36
    %s53 = sphi 0, %s37
    %s61 = sphi 0, %s63
    %s64 = sphi 0, %s61
    %s65 = sphi 0, %s64
    %s81 = sphi 0, %s65
    %s89 = sphi 0, %s91
    %s92 = sphi 0, %s89
    %s93 = sphi 0, %s92
    %s109 = sphi 0, %s93
    %s115 = sphi 0, %s117
    %s118 = sphi 0, %s115
    %s119 = sphi 0, %s118
    %s135 = sphi 0, %s119
    %s141 = sphi 0, %s143
    %s144 = sphi 0, %s141
    %s145 = sphi 0, %s144
    %s161 = sphi 0, %s145
  $region4: #{_forward.11} parent=0 // loop_header_branch
    %14 = sbr.rel (%p12) target = $region8
  $region5: #{_forward.11} parent=0 // loop_body
    %s16 = ssub.s32 %s11, 1
    %s17 = ssub.s32 %s11, 2
    %s24 = sadd.s32 1, %s19
    %p25 = scmp.ge.s32.totalorder %s24, 1
    %s26 = scalar_select %p25, 0, %s24
    %s27 = sadd.s32 1, %s18
    %s28 = scalar_select %p25, %s27, %s18
    %p29 = scmp.ge.s32.totalorder %s28, 8
    %s30 = scalar_select %p29, 0, %s28
    %s31 = ssub.s32 %s18, %s30
    %p32 = scmp.eq.s32.totalorder %s31, 0
    %s34 = sadd.s32 %s33, 1
    %s35 = scalar_select %p32, %s33, %s34
    %p38 = pneg %p32
    %p39 = scmp.eq.s32.totalorder %s11, 7
    %p40 = por %p38, %p39
    %p41 = scmp.ne.s32.totalorder %s33, %s36
    %p42 = scmp.eq.s32.totalorder %s11, 0
    %p43 = por %p41, %p42
    %p44 = scmp.ne.s32.totalorder %s33, %s36
    %p45 = scmp.eq.s32.totalorder %s16, 7
    %p46 = por %p44, %p45
    %p47 = scmp.ne.s32.totalorder %s36, %s37
    %p48 = scmp.eq.s32.totalorder %s16, 0
    %p49 = por %p47, %p48
    %p50 = scmp.ne.s32.totalorder %s36, %s37
    %p51 = scmp.eq.s32.totalorder %s17, 7
    %p52 = por %p50, %p51
    %p54 = scmp.ne.s32.totalorder %s37, %s53
    %p55 = scmp.eq.s32.totalorder %s17, 0
    %p56 = por %p54, %p55
    %s57 = ssub.s32 %s18, %s30
    %s58 = ssub.s32 %s19, %s26
    %s59 = sor.u32 %s57, %s58
    %p60 = scmp.eq.s32.totalorder %s59, 0
    %s62 = sadd.s32 %s61, 1
    %s63 = scalar_select %p60, %s61, %s62
    %p66 = pneg %p60
    %p67 = scmp.eq.s32.totalorder %s11, 7
    %p68 = por %p66, %p67
    %p69 = scmp.ne.s32.totalorder %s61, %s64
    %p70 = scmp.eq.s32.totalorder %s11, 0
    %p71 = por %p69, %p70
    %p72 = scmp.ne.s32.totalorder %s61, %s64
    %p73 = scmp.eq.s32.totalorder %s16, 7
    %p74 = por %p72, %p73
    %p75 = scmp.ne.s32.totalorder %s64, %s65
    %p76 = scmp.eq.s32.totalorder %s16, 0
    %p77 = por %p75, %p76
    %p78 = scmp.ne.s32.totalorder %s64, %s65
    %p79 = scmp.eq.s32.totalorder %s17, 7
    %p80 = por %p78, %p79
    %p82 = scmp.ne.s32.totalorder %s65, %s81
    %p83 = scmp.eq.s32.totalorder %s17, 0
    %p84 = por %p82, %p83
    %s85 = ssub.s32 %s18, %s30
    %s86 = ssub.s32 %s19, %s26
    %s87 = sor.u32 %s85, %s86
    %p88 = scmp.eq.s32.totalorder %s87, 0
    %s90 = sadd.s32 %s89, 1
    %s91 = scalar_select %p88, %s89, %s90
    %p94 = pneg %p88
    %p95 = scmp.eq.s32.totalorder %s11, 7
    %p96 = por %p94, %p95
    %p97 = scmp.ne.s32.totalorder %s89, %s92
    %p98 = scmp.eq.s32.totalorder %s11, 0
    %p99 = por %p97, %p98
    %p100 = scmp.ne.s32.totalorder %s89, %s92
    %p101 = scmp.eq.s32.totalorder %s16, 7
    %p102 = por %p100, %p101
    %p103 = scmp.ne.s32.totalorder %s92, %s93
    %p104 = scmp.eq.s32.totalorder %s16, 0
    %p105 = por %p103, %p104
    %p106 = scmp.ne.s32.totalorder %s92, %s93
    %p107 = scmp.eq.s32.totalorder %s17, 7
    %p108 = por %p106, %p107
    %p110 = scmp.ne.s32.totalorder %s93, %s109
    %p111 = scmp.eq.s32.totalorder %s17, 0
    %p112 = por %p110, %p111
    %s113 = ssub.s32 %s18, %s30
    %p114 = scmp.eq.s32.totalorder %s113, 0
    %s116 = sadd.s32 %s115, 1
    %s117 = scalar_select %p114, %s115, %s116
    %p120 = pneg %p114
    %p121 = scmp.eq.s32.totalorder %s11, 7
    %p122 = por %p120, %p121
    %p123 = scmp.ne.s32.totalorder %s115, %s118
    %p124 = scmp.eq.s32.totalorder %s11, 0
    %p125 = por %p123, %p124
    %p126 = scmp.ne.s32.totalorder %s115, %s118
    %p127 = scmp.eq.s32.totalorder %s16, 7
    %p128 = por %p126, %p127
    %p129 = scmp.ne.s32.totalorder %s118, %s119
    %p130 = scmp.eq.s32.totalorder %s16, 0
    %p131 = por %p129, %p130
    %p132 = scmp.ne.s32.totalorder %s118, %s119
    %p133 = scmp.eq.s32.totalorder %s17, 7
    %p134 = por %p132, %p133
    %p136 = scmp.ne.s32.totalorder %s119, %s135
    %p137 = scmp.eq.s32.totalorder %s17, 0
    %p138 = por %p136, %p137
    %s139 = ssub.s32 %s18, %s30
    %p140 = scmp.eq.s32.totalorder %s139, 0
    %s142 = sadd.s32 %s141, 1
    %s143 = scalar_select %p140, %s141, %s142
    %p146 = pneg %p140
    %p147 = scmp.eq.s32.totalorder %s11, 7
    %p148 = por %p146, %p147
    %p149 = scmp.ne.s32.totalorder %s141, %s144
    %p150 = scmp.eq.s32.totalorder %s11, 0
    %p151 = por %p149, %p150
    %p152 = scmp.ne.s32.totalorder %s141, %s144
    %p153 = scmp.eq.s32.totalorder %s16, 7
    %p154 = por %p152, %p153
    %p155 = scmp.ne.s32.totalorder %s144, %s145
    %p156 = scmp.eq.s32.totalorder %s16, 0
    %p157 = por %p155, %p156
    %p158 = scmp.ne.s32.totalorder %s144, %s145
    %p159 = scmp.eq.s32.totalorder %s17, 7
    %p160 = por %p158, %p159
    %p162 = scmp.ne.s32.totalorder %s145, %s161
    %p163 = scmp.eq.s32.totalorder %s17, 0
    %p164 = por %p162, %p163
    %p165 = scmp.le.s32.totalorder 1, %s11
    %p166 = scmp.lt.s32.totalorder %s11, 9
    %p167 = pnand %p165, %p166
    %p168 = pneg %p167
    // Predicated region
    $region9: #{_forward.11} parent=5 // pred_check
      _
    $region10: #{_forward.11} parent=5 // pred_check_branch
      %170 = sbr.rel (%p167) target = $region12
    $region11: #{_forward.11} parent=5 // pred_region
      %s171 = ssub.s32 %s11, 1
    $region12: #{_forward.11} parent=5 // pred_fallthru
      _
    %p172 = scmp.lt.s32.totalorder %s11, 8
    // Predicated region
    $region13: #{_forward.11} parent=5 // pred_check
      %p173 = pneg %p172
    $region14: #{_forward.11} parent=5 // pred_check_branch
      %175 = sbr.rel (%p173) target = $region16
    $region15: #{_forward.11} parent=5 // pred_region
      // Predicated region
      $region17: #{_forward.11} parent=15 // pred_check
        %p176 = pneg %p43
      $region18: #{_forward.11} parent=15 // pred_check_branch
        %178 = sbr.rel (%p176) target = $region20
      $region19: #{_forward.11} parent=15 // pred_region
        %p179 = scmp.lt.s32.totalorder %s18, 7
        %s180 = scalar_select %p179, %s18, 7
        %s181 = smul.addr %s180, 4
        %s182 = scalar_lea.vmem %s0, %s181
      $region20: #{_forward.11} parent=15 // pred_fallthru
        _
      // Predicated region
      $region21: #{_forward.11} parent=15 // pred_check
        %p183 = pneg %p71
      $region22: #{_forward.11} parent=15 // pred_check_branch
        %185 = sbr.rel (%p183) target = $region24
      $region23: #{_forward.11} parent=15 // pred_region
        %p186 = scmp.lt.s32.totalorder %s18, 7
        %s187 = scalar_select %p186, %s18, 7
        %p188 = scmp.lt.s32.totalorder %s19, 0
        %s189 = scalar_select %p188, %s19, 0
        %s190 = smul.addr %s187, 8
        %s191 = sadd.s32 %s189, %s190
        %s192 = smul.addr %s191, 4
        %s193 = scalar_lea.vmem %s1, %s192
      $region24: #{_forward.11} parent=15 // pred_fallthru
        _
    $region16: #{_forward.11} parent=5 // pred_fallthru
      _
    %p194 = scmp.le.s32.totalorder 1, %s11
    %p195 = scmp.lt.s32.totalorder %s11, 9
    %p196 = pnand %p194, %p195
    %p197 = pneg %p196
    // Predicated region
    $region25: #{_forward.11} parent=5 // pred_check
      _
    $region26: #{_forward.11} parent=5 // pred_check_branch
      %199 = sbr.rel (%p196) target = $region28
    $region27: #{_forward.11} parent=5 // pred_region
      %s200 = ssub.s32 %s11, 1
      %p201 = scmp.lt.s32.totalorder %s20, 7
      %s202 = scalar_select %p201, %s20, 7
      %s203 = smul.addr %s202, 4
      %s204 = scalar_lea.vmem %s0, %s203
      %p205 = pneg %p49
      %p206 = pneg %p46
      %p207 = scmp.lt.s32.totalorder %s20, 7
      %s208 = scalar_select %p207, %s20, 7
      %p209 = scmp.lt.s32.totalorder %s21, 0
      %s210 = scalar_select %p209, %s21, 0
      %s211 = smul.addr %s208, 8
      %s212 = sadd.s32 %s210, %s211
      %s213 = smul.addr %s212, 4
      %s214 = scalar_lea.vmem %s1, %s213
      %p215 = pneg %p77
      %p216 = pneg %p74
      %p217 = pneg %p105
      %p218 = pneg %p102
      %p219 = scmp.lt.s32.totalorder %s20, 7
      %s220 = scalar_select %p219, %s20, 7
      %p221 = scmp.lt.s32.totalorder %s21, 0
      %s222 = scalar_select %p221, %s21, 0
      %s223 = sadd.s32 %s222, %s220
      %s224 = smul.addr %s223, 8
      %s225 = scalar_lea.vmem %s2, %s224
      %p226 = pneg %p131
      %p227 = pneg %p128
      %p228 = scmp.lt.s32.totalorder %s20, 7
      %s229 = scalar_select %p228, %s20, 7
      %s230 = smul.addr %s229, 8
      %s231 = scalar_lea.vmem %s3, %s230
      %p232 = pneg %p157
      %p233 = pneg %p154
      %p234 = scmp.lt.s32.totalorder %s20, 7
      %s235 = scalar_select %p234, %s20, 7
      %s236 = smul.addr %s235, 8
      %s237 = scalar_lea.vmem %s4, %s236
      %p238 = scmp.lt.s32.totalorder %s20, 7
      %s239 = scalar_select %p238, %s20, 7
      %s240 = smul.addr %s239, 4
      %s241 = scalar_lea.vmem %s0, %s240
      %p242 = scmp.lt.s32.totalorder %s20, 7
      %s243 = scalar_select %p242, %s20, 7
      %p244 = scmp.lt.s32.totalorder %s21, 0
      %s245 = scalar_select %p244, %s21, 0
      %s246 = smul.addr %s243, 8
      %s247 = sadd.s32 %s245, %s246
      %s248 = smul.addr %s247, 4
      %s249 = scalar_lea.vmem %s1, %s248
      %p250 = scmp.lt.s32.totalorder %s20, 7
      %s251 = scalar_select %p250, %s20, 7
      %p252 = scmp.lt.s32.totalorder %s21, 0
      %s253 = scalar_select %p252, %s21, 0
      %s254 = sadd.s32 %s253, %s251
      %s255 = smul.addr %s254, 8
      %s256 = scalar_lea.vmem %s2, %s255
      %p257 = scmp.lt.s32.totalorder %s20, 7
      %s258 = scalar_select %p257, %s20, 7
      %s259 = smul.addr %s258, 8
      %s260 = scalar_lea.vmem %s3, %s259
      %p261 = scmp.lt.s32.totalorder %s20, 7
      %s262 = scalar_select %p261, %s20, 7
      %s263 = smul.addr %s262, 8
      %s264 = scalar_lea.vmem %s4, %s263
      %v266 = vld [vmem:[%s241] sm:$0xf]
      %v267 = vld [vmem:[%s249] sm:$0xf]
      %v268 = vld [vmem:[%s249 + $0x4] sm:$0xf]
      %v269 = vld [vmem:[%s249 + $0x8] sm:$0xf]
      %v270 = vld [vmem:[%s249 + $0xc] sm:$0xf]
      %v271 = vld [vmem:[%s249 + $0x10] sm:$0xf]
      %v272 = vld [vmem:[%s249 + $0x14] sm:$0xf]
      %v273 = vld [vmem:[%s249 + $0x18] sm:$0xf]
      %v274 = vld [vmem:[%s249 + $0x1c] sm:$0xf]
      %v283 = vunpack.c.l.b16 %v267
      %v284 = vunpack.c.l.b16 %v268
      %v285 = vunpack.c.l.b16 %v269
      %v286 = vunpack.c.l.b16 %v270
      %v287 = vunpack.c.l.b16 %v271
      %v288 = vunpack.c.l.b16 %v272
      %v289 = vunpack.c.l.b16 %v273
      %v290 = vunpack.c.l.b16 %v274
      %v291 = vpack.c.b16 %v284, %v283
      %v292 = vpack.c.b16 %v286, %v285
      %v293 = vpack.c.b16 %v288, %v287
      %v294 = vpack.c.b16 %v290, %v289
      %vm299 = vcmask 523264
      %v301 = vsel %vm299, %v266, 0
      %303 = vmatprep.subr.bf16.mxu0 0
      %304 = vmatpush1.bf16.msra.mxu0 0
      %305 = vmatprep.subr.bf16.mxu0 0
      %306 = vmatpush1.bf16.msra.mxu0 0
      %307 = vmatprep.subr.bf16.mxu0 0
      %308 = vmatpush1.bf16.msra.mxu0 0
      %309 = vmatprep.subr.bf16.mxu0 0
      %310 = vmatpush1.bf16.msra.mxu0 0
      %311 = vmatprep.subr.bf16.mxu0 0
      %312 = vmatpush1.bf16.msra.mxu0 %v294
      %313 = vmatprep.subr.bf16.mxu0 0
      %314 = vmatpush1.bf16.msra.mxu0 %v293
      %315 = vmatprep.subr.bf16.mxu0 0
      %316 = vmatpush1.bf16.msra.mxu0 %v292
      %317 = vmatprep.subr.bf16.mxu0 0
      %318 = vmatpush1.bf16.msra.mxu0 %v291
      %319 = vmatprep.subr.bf16.mxu0 0
      %320 = vmatpush2.bf16.msra.mxu0 0
      %321 = vmatprep.subr.bf16.mxu0 0
      %322 = vmatpush2.bf16.msra.mxu0 0
      %323 = vmatprep.subr.bf16.mxu0 0
      %324 = vmatpush2.bf16.msra.mxu0 0
      %325 = vmatprep.subr.bf16.mxu0 0
      %326 = vmatpush2.bf16.msra.mxu0 0
      %327 = vmatprep.subr.bf16.mxu0 0
      %328 = vmatpush2.bf16.msra.mxu0 0
      %329 = vmatprep.subr.bf16.mxu0 0
      %330 = vmatpush2.bf16.msra.mxu0 0
      %331 = vmatprep.subr.bf16.mxu0 0
      %332 = vmatpush2.bf16.msra.mxu0 0
      %333 = vmatprep.subr.bf16.mxu0 0
      %334 = vmatpush2.bf16.msra.mxu0 0
      %335 = vmatprep.mubr.bf16.mxu0 0
      %336 = vmatmul.mubr.bf16.gmra.mxu0 %v301
      %v337 = vpop.f32.mrf.mxu0
      %v338 = vadd.f32 0.0, %v337
      %v339 = vpop.f32.mrf.mxu0
      %v340 = vpop.f32.mrf.mxu0
      %v341 = vpop.f32.mrf.mxu0
      %342 = vdwg.mxu0
      %343 = vst [vmem:[%s256] sm:$0xff] %v338
      %p344 = scmp.eq.s32.totalorder %s21, 0
      // Predicated region
      $region29: #{_forward.11} parent=27 // pred_check
        %p345 = pneg %p344
      $region30: #{_forward.11} parent=27 // pred_check_branch
        %347 = sbr.rel (%p345) target = $region32
      $region31: #{_forward.11} parent=27 // pred_region
        %vm348 = vcmask 7168
        %349 = vst.msk [vmem:[%s260] sm:$0xff] %vm348, 0.0
        %350 = vst.msk [vmem:[%s264] sm:$0xff] %vm348, 0.0
      $region32: #{_forward.11} parent=27 // pred_fallthru
        _
      %v351 = vld [vmem:[%s260] sm:$0xff]
      %352 = vadd.xlane.f32.xlu0 %v338
      %v353 = vpop.xlane.xlu0 %352
      %v354 = vadd.f32 %v351, %v353
      %vm355 = vcmask 7168
      %356 = vst.msk [vmem:[%s260] sm:$0xff] %vm355, %v354
      %v357 = vld [vmem:[%s264] sm:$0xff]
      %v358 = vmul.f32 %v338, %v338
      %359 = vadd.xlane.f32.xlu0 %v358
      %v360 = vpop.xlane.xlu0 %359
      %v361 = vadd.f32 %v357, %v360
      %362 = vst.msk [vmem:[%s264] sm:$0xff] %vm355, %v361
      %p363 = scmp.lt.s32.totalorder %s20, 7
      %s364 = scalar_select %p363, %s20, 7
      %p365 = scmp.lt.s32.totalorder %s21, 0
      %s366 = scalar_select %p365, %s21, 0
      %s367 = sadd.s32 %s366, %s364
      %s368 = smul.addr %s367, 8
      %s369 = scalar_lea.vmem %s2, %s368
      %p370 = scmp.lt.s32.totalorder %s20, 7
      %s371 = scalar_select %p370, %s20, 7
      %s372 = smul.addr %s371, 8
      %s373 = scalar_lea.vmem %s3, %s372
      %p374 = scmp.lt.s32.totalorder %s20, 7
      %s375 = scalar_select %p374, %s20, 7
      %s376 = smul.addr %s375, 8
      %s377 = scalar_lea.vmem %s4, %s376
      // Predicated region
      $region33: #{_forward.11} parent=27 // pred_check
        %p378 = pneg %p102
      $region34: #{_forward.11} parent=27 // pred_check_branch
        %380 = sbr.rel (%p378) target = $region36
      $region35: #{_forward.11} parent=27 // pred_region
        _
      $region36: #{_forward.11} parent=27 // pred_fallthru
        _
      // Predicated region
      $region37: #{_forward.11} parent=27 // pred_check
        %p381 = pneg %p128
      $region38: #{_forward.11} parent=27 // pred_check_branch
        %383 = sbr.rel (%p381) target = $region40
      $region39: #{_forward.11} parent=27 // pred_region
        _
      $region40: #{_forward.11} parent=27 // pred_fallthru
        _
      // Predicated region
      $region41: #{_forward.11} parent=27 // pred_check
        %p384 = pneg %p154
      $region42: #{_forward.11} parent=27 // pred_check_branch
        %386 = sbr.rel (%p384) target = $region44
      $region43: #{_forward.11} parent=27 // pred_region
        _
      $region44: #{_forward.11} parent=27 // pred_fallthru
        _
    $region28: #{_forward.11} parent=5 // pred_fallthru
      _
    %p387 = scmp.le.s32.totalorder 2, %s11
    // Predicated region
    $region45: #{_forward.11} parent=5 // pred_check
      %p388 = pneg %p387
    $region46: #{_forward.11} parent=5 // pred_check_branch
      %390 = sbr.rel (%p388) target = $region48
    $region47: #{_forward.11} parent=5 // pred_region
      %s391 = ssub.s32 %s11, 2
      // Predicated region
      $region49: #{_forward.11} parent=47 // pred_check
        %p392 = pneg %p108
      $region50: #{_forward.11} parent=47 // pred_check_branch
        %394 = sbr.rel (%p392) target = $region52
      $region51: #{_forward.11} parent=47 // pred_region
        %p395 = scmp.lt.s32.totalorder %s22, 7
        %s396 = scalar_select %p395, %s22, 7
        %p397 = scmp.lt.s32.totalorder %s23, 0
        %s398 = scalar_select %p397, %s23, 0
        %s399 = sadd.s32 %s398, %s396
        %s400 = smul.addr %s399, 8
        %s401 = scalar_lea.vmem %s2, %s400
      $region52: #{_forward.11} parent=47 // pred_fallthru
        _
      // Predicated region
      $region53: #{_forward.11} parent=47 // pred_check
        %p402 = pneg %p134
      $region54: #{_forward.11} parent=47 // pred_check_branch
        %404 = sbr.rel (%p402) target = $region56
      $region55: #{_forward.11} parent=47 // pred_region
        %p405 = scmp.lt.s32.totalorder %s22, 7
        %s406 = scalar_select %p405, %s22, 7
        %s407 = smul.addr %s406, 8
        %s408 = scalar_lea.vmem %s3, %s407
      $region56: #{_forward.11} parent=47 // pred_fallthru
        _
      // Predicated region
      $region57: #{_forward.11} parent=47 // pred_check
        %p409 = pneg %p160
      $region58: #{_forward.11} parent=47 // pred_check_branch
        %411 = sbr.rel (%p409) target = $region60
      $region59: #{_forward.11} parent=47 // pred_region
        %p412 = scmp.lt.s32.totalorder %s22, 7
        %s413 = scalar_select %p412, %s22, 7
        %s414 = smul.addr %s413, 8
        %s415 = scalar_lea.vmem %s4, %s414
      $region60: #{_forward.11} parent=47 // pred_fallthru
        _
    $region48: #{_forward.11} parent=5 // pred_fallthru
      _
  $region6: #{_forward.11} parent=0 // loop_footer
    %s15 = sadd.s32 1, %s11
  $region7: #{_forward.11} parent=0 // loop_footer_branch
    %10 = sbr.rel target = $region3
  $region8: #{_forward.11} parent=0 // loop_exit
    _

// kernel: _forward.13
$region0: #{_forward.13}
  #allocation0 [shape = 'u32[]', space=smem, size = 0x4, offset = 0x4, fixed_abs, tag = 'smem constant byte address 0x4 - core index']
  #allocation1 [shape = 'u32[144,128]{1,0:T(1,128)}', space=vmem, size = 0x12000, scoped, tag = 'internal scratch']
  %s0 = inlined_call_operand.vmem [shape: bf16[8,8,32], index: 0, kind: input, shape index: {}]
  %s1 = inlined_call_operand.vmem [shape: bf16[8,32,1024], index: 1, kind: input, shape index: {}]
  %s2 = inlined_call_operand.vmem [shape: f32[8,8,1024], index: 2, kind: output, shape index: {}]
  %s3 = sld [smem:[#allocation0]]
  $region41: #{_forward.13} parent=0
    _
  %s5 = ssub.s32 1, %s3
  %s6 = scalar_select 0, %s5, %s3
  loop: start=0, step=1, limit=10
  $region2: #{_forward.13} parent=0 // loop_pre_header
    _
  $region3: #{_forward.13} parent=0 // loop_header
    %s8 = sphi 0, %s12
    %p9 = scmp.ge.s32.totalorder %s8, 10
    %s15 = sphi 0, %s27
    %s16 = sphi 0, %s23
    %s17 = sphi 0, %s15
    %s18 = sphi 0, %s16
    %s19 = sphi 0, %s17
    %s20 = sphi 0, %s18
    %s30 = sphi 0, %s32
    %s33 = sphi 0, %s30
    %s34 = sphi 0, %s33
    %s50 = sphi 0, %s34
    %s58 = sphi 0, %s60
    %s61 = sphi 0, %s58
    %s62 = sphi 0, %s61
    %s78 = sphi 0, %s62
    %s86 = sphi 0, %s88
    %s89 = sphi 0, %s86
    %s90 = sphi 0, %s89
    %s106 = sphi 0, %s90
  $region4: #{_forward.13} parent=0 // loop_header_branch
    %11 = sbr.rel (%p9) target = $region8
  $region5: #{_forward.13} parent=0 // loop_body
    %s13 = ssub.s32 %s8, 1
    %s14 = ssub.s32 %s8, 2
    %s21 = sadd.s32 1, %s16
    %p22 = scmp.ge.s32.totalorder %s21, 1
    %s23 = scalar_select %p22, 0, %s21
    %s24 = sadd.s32 1, %s15
    %s25 = scalar_select %p22, %s24, %s15
    %p26 = scmp.ge.s32.totalorder %s25, 8
    %s27 = scalar_select %p26, 0, %s25
    %s28 = ssub.s32 %s15, %s27
    %p29 = scmp.eq.s32.totalorder %s28, 0
    %s31 = sadd.s32 %s30, 1
    %s32 = scalar_select %p29, %s30, %s31
    %p35 = pneg %p29
    %p36 = scmp.eq.s32.totalorder %s8, 7
    %p37 = por %p35, %p36
    %p38 = scmp.ne.s32.totalorder %s30, %s33
    %p39 = scmp.eq.s32.totalorder %s8, 0
    %p40 = por %p38, %p39
    %p41 = scmp.ne.s32.totalorder %s30, %s33
    %p42 = scmp.eq.s32.totalorder %s13, 7
    %p43 = por %p41, %p42
    %p44 = scmp.ne.s32.totalorder %s33, %s34
    %p45 = scmp.eq.s32.totalorder %s13, 0
    %p46 = por %p44, %p45
    %p47 = scmp.ne.s32.totalorder %s33, %s34
    %p48 = scmp.eq.s32.totalorder %s14, 7
    %p49 = por %p47, %p48
    %p51 = scmp.ne.s32.totalorder %s34, %s50
    %p52 = scmp.eq.s32.totalorder %s14, 0
    %p53 = por %p51, %p52
    %s54 = ssub.s32 %s15, %s27
    %s55 = ssub.s32 %s16, %s23
    %s56 = sor.u32 %s54, %s55
    %p57 = scmp.eq.s32.totalorder %s56, 0
    %s59 = sadd.s32 %s58, 1
    %s60 = scalar_select %p57, %s58, %s59
    %p63 = pneg %p57
    %p64 = scmp.eq.s32.totalorder %s8, 7
    %p65 = por %p63, %p64
    %p66 = scmp.ne.s32.totalorder %s58, %s61
    %p67 = scmp.eq.s32.totalorder %s8, 0
    %p68 = por %p66, %p67
    %p69 = scmp.ne.s32.totalorder %s58, %s61
    %p70 = scmp.eq.s32.totalorder %s13, 7
    %p71 = por %p69, %p70
    %p72 = scmp.ne.s32.totalorder %s61, %s62
    %p73 = scmp.eq.s32.totalorder %s13, 0
    %p74 = por %p72, %p73
    %p75 = scmp.ne.s32.totalorder %s61, %s62
    %p76 = scmp.eq.s32.totalorder %s14, 7
    %p77 = por %p75, %p76
    %p79 = scmp.ne.s32.totalorder %s62, %s78
    %p80 = scmp.eq.s32.totalorder %s14, 0
    %p81 = por %p79, %p80
    %s82 = ssub.s32 %s15, %s27
    %s83 = ssub.s32 %s16, %s23
    %s84 = sor.u32 %s82, %s83
    %p85 = scmp.eq.s32.totalorder %s84, 0
    %s87 = sadd.s32 %s86, 1
    %s88 = scalar_select %p85, %s86, %s87
    %p91 = pneg %p85
    %p92 = scmp.eq.s32.totalorder %s8, 7
    %p93 = por %p91, %p92
    %p94 = scmp.ne.s32.totalorder %s86, %s89
    %p95 = scmp.eq.s32.totalorder %s8, 0
    %p96 = por %p94, %p95
    %p97 = scmp.ne.s32.totalorder %s86, %s89
    %p98 = scmp.eq.s32.totalorder %s13, 7
    %p99 = por %p97, %p98
    %p100 = scmp.ne.s32.totalorder %s89, %s90
    %p101 = scmp.eq.s32.totalorder %s13, 0
    %p102 = por %p100, %p101
    %p103 = scmp.ne.s32.totalorder %s89, %s90
    %p104 = scmp.eq.s32.totalorder %s14, 7
    %p105 = por %p103, %p104
    %p107 = scmp.ne.s32.totalorder %s90, %s106
    %p108 = scmp.eq.s32.totalorder %s14, 0
    %p109 = por %p107, %p108
    %p110 = scmp.le.s32.totalorder 1, %s8
    %p111 = scmp.lt.s32.totalorder %s8, 9
    %p112 = pnand %p110, %p111
    %p113 = pneg %p112
    // Predicated region
    $region9: #{_forward.13} parent=5 // pred_check
      _
    $region10: #{_forward.13} parent=5 // pred_check_branch
      %115 = sbr.rel (%p112) target = $region12
    $region11: #{_forward.13} parent=5 // pred_region
      %s116 = ssub.s32 %s8, 1
    $region12: #{_forward.13} parent=5 // pred_fallthru
      _
    %p117 = scmp.lt.s32.totalorder %s8, 8
    // Predicated region
    $region13: #{_forward.13} parent=5 // pred_check
      %p118 = pneg %p117
    $region14: #{_forward.13} parent=5 // pred_check_branch
      %120 = sbr.rel (%p118) target = $region16
    $region15: #{_forward.13} parent=5 // pred_region
      // Predicated region
      $region17: #{_forward.13} parent=15 // pred_check
        %p121 = pneg %p40
      $region18: #{_forward.13} parent=15 // pred_check_branch
        %123 = sbr.rel (%p121) target = $region20
      $region19: #{_forward.13} parent=15 // pred_region
        %p124 = scmp.lt.s32.totalorder %s15, 7
        %s125 = scalar_select %p124, %s15, 7
        %s126 = smul.addr %s125, 4
        %s127 = scalar_lea.vmem %s0, %s126
      $region20: #{_forward.13} parent=15 // pred_fallthru
        _
      // Predicated region
      $region21: #{_forward.13} parent=15 // pred_check
        %p128 = pneg %p68
      $region22: #{_forward.13} parent=15 // pred_check_branch
        %130 = sbr.rel (%p128) target = $region24
      $region23: #{_forward.13} parent=15 // pred_region
        %s131 = smul.u32 8, %s16
        %p132 = scmp.lt.s32.totalorder %s15, 7
        %s133 = scalar_select %p132, %s15, 7
        %p134 = scmp.lt.s32.totalorder %s131, 7
        %s135 = scalar_select %p134, %s131, 7
        %s136 = smul.addr %s133, 32
        %s137 = sadd.s32 %s135, %s136
        %s138 = smul.addr %s137, 4
        %s139 = scalar_lea.vmem %s1, %s138
        %s140 = smul.u32 8, %s16
      $region24: #{_forward.13} parent=15 // pred_fallthru
        _
    $region16: #{_forward.13} parent=5 // pred_fallthru
      _
    %p141 = scmp.le.s32.totalorder 1, %s8
    %p142 = scmp.lt.s32.totalorder %s8, 9
    %p143 = pnand %p141, %p142
    %p144 = pneg %p143
    // Predicated region
    $region25: #{_forward.13} parent=5 // pred_check
      _
    $region26: #{_forward.13} parent=5 // pred_check_branch
      %146 = sbr.rel (%p143) target = $region28
    $region27: #{_forward.13} parent=5 // pred_region
      %s147 = ssub.s32 %s8, 1
      %p148 = scmp.lt.s32.totalorder %s17, 7
      %s149 = scalar_select %p148, %s17, 7
      %s150 = smul.addr %s149, 4
      %s151 = scalar_lea.vmem %s0, %s150
      %p152 = pneg %p46
      %p153 = pneg %p43
      %s154 = smul.u32 8, %s18
      %p155 = scmp.lt.s32.totalorder %s17, 7
      %s156 = scalar_select %p155, %s17, 7
      %p157 = scmp.lt.s32.totalorder %s154, 7
      %s158 = scalar_select %p157, %s154, 7
      %s159 = smul.addr %s156, 32
      %s160 = sadd.s32 %s158, %s159
      %s161 = smul.addr %s160, 4
      %s162 = scalar_lea.vmem %s1, %s161
      %p163 = pneg %p74
      %p164 = pneg %p71
      %p165 = pneg %p102
      %p166 = pneg %p99
      %s167 = smul.u32 8, %s18
      %p168 = scmp.lt.s32.totalorder %s17, 7
      %s169 = scalar_select %p168, %s17, 7
      %p170 = scmp.lt.s32.totalorder %s167, 7
      %s171 = scalar_select %p170, %s167, 7
      %s172 = smul.addr %s169, 8
      %s173 = sadd.s32 %s171, %s172
      %s174 = smul.addr %s173, 8
      %s175 = scalar_lea.vmem %s2, %s174
      %p176 = scmp.lt.s32.totalorder %s17, 7
      %s177 = scalar_select %p176, %s17, 7
      %s178 = smul.addr %s177, 4
      %s179 = scalar_lea.vmem %s0, %s178
      %s180 = smul.u32 8, %s18
      %p181 = scmp.lt.s32.totalorder %s17, 7
      %s182 = scalar_select %p181, %s17, 7
      %p183 = scmp.lt.s32.totalorder %s180, 7
      %s184 = scalar_select %p183, %s180, 7
      %s185 = smul.addr %s182, 32
      %s186 = sadd.s32 %s184, %s185
      %s187 = smul.addr %s186, 4
      %s188 = scalar_lea.vmem %s1, %s187
      %s189 = smul.u32 8, %s18
      %s190 = smul.u32 8, %s18
      %p191 = scmp.lt.s32.totalorder %s17, 7
      %s192 = scalar_select %p191, %s17, 7
      %p193 = scmp.lt.s32.totalorder %s190, 7
      %s194 = scalar_select %p193, %s190, 7
      %s195 = smul.addr %s192, 8
      %s196 = sadd.s32 %s194, %s195
      %s197 = smul.addr %s196, 8
      %s198 = scalar_lea.vmem %s2, %s197
      %s199 = smul.u32 8, %s18
      %v201 = vld [vmem:[%s179] sm:$0xf]
      %v202 = vld [vmem:[%s188] sm:$0xff]
      %v203 = vld [vmem:[%s188 + $0x8] sm:$0xff]
      %v204 = vld [vmem:[%s188 + $0x10] sm:$0xff]
      %v205 = vld [vmem:[%s188 + $0x18] sm:$0xff]
      %v206 = vld [vmem:[%s188 + $0x20] sm:$0xff]
      %v207 = vld [vmem:[%s188 + $0x28] sm:$0xff]
      %v208 = vld [vmem:[%s188 + $0x30] sm:$0xff]
      %v209 = vld [vmem:[%s188 + $0x38] sm:$0xff]
      %v210 = vld [vmem:[%s188 + $0x40] sm:$0xff]
      %v211 = vld [vmem:[%s188 + $0x48] sm:$0xff]
      %v212 = vld [vmem:[%s188 + $0x50] sm:$0xff]
      %v213 = vld [vmem:[%s188 + $0x58] sm:$0xff]
      %v214 = vld [vmem:[%s188 + $0x60] sm:$0xff]
      %v215 = vld [vmem:[%s188 + $0x68] sm:$0xff]
      %v216 = vld [vmem:[%s188 + $0x70] sm:$0xff]
      %v217 = vld [vmem:[%s188 + $0x78] sm:$0xff]
      %v234 = vunpack.c.l.b16 %v202
      %v235 = vunpack.c.h.b16 %v202
      %v236 = vunpack.c.l.b16 %v203
      %v237 = vunpack.c.h.b16 %v203
      %v238 = vunpack.c.l.b16 %v204
      %v239 = vunpack.c.h.b16 %v204
      %v240 = vunpack.c.l.b16 %v205
      %v241 = vunpack.c.h.b16 %v205
      %v242 = vunpack.c.l.b16 %v206
      %v243 = vunpack.c.h.b16 %v206
      %v244 = vunpack.c.l.b16 %v207
      %v245 = vunpack.c.h.b16 %v207
      %v246 = vunpack.c.l.b16 %v208
      %v247 = vunpack.c.h.b16 %v208
      %v248 = vunpack.c.l.b16 %v209
      %v249 = vunpack.c.h.b16 %v209
      %v250 = vunpack.c.l.b16 %v210
      %v251 = vunpack.c.h.b16 %v210
      %v252 = vunpack.c.l.b16 %v211
      %v253 = vunpack.c.h.b16 %v211
      %v254 = vunpack.c.l.b16 %v212
      %v255 = vunpack.c.h.b16 %v212
      %v256 = vunpack.c.l.b16 %v213
      %v257 = vunpack.c.h.b16 %v213
      %v258 = vunpack.c.l.b16 %v214
      %v259 = vunpack.c.h.b16 %v214
      %v260 = vunpack.c.l.b16 %v215
      %v261 = vunpack.c.h.b16 %v215
      %v262 = vunpack.c.l.b16 %v216
      %v263 = vunpack.c.h.b16 %v216
      %v264 = vunpack.c.l.b16 %v217
      %v265 = vunpack.c.h.b16 %v217
      %v266 = vpack.c.b16 %v242, %v234
      %v267 = vpack.c.b16 %v243, %v235
      %v268 = vpack.c.b16 %v244, %v236
      %v269 = vpack.c.b16 %v245, %v237
      %v270 = vpack.c.b16 %v246, %v238
      %v271 = vpack.c.b16 %v247, %v239
      %v272 = vpack.c.b16 %v248, %v240
      %v273 = vpack.c.b16 %v249, %v241
      %v274 = vpack.c.b16 %v258, %v250
      %v275 = vpack.c.b16 %v259, %v251
      %v276 = vpack.c.b16 %v260, %v252
      %v277 = vpack.c.b16 %v261, %v253
      %v278 = vpack.c.b16 %v262, %v254
      %v279 = vpack.c.b16 %v263, %v255
      %v280 = vpack.c.b16 %v264, %v256
      %v281 = vpack.c.b16 %v265, %v257
      %vm298 = vcmask 261120
      %v300 = vsel %vm298, %v201, 0
      %302 = vmatprep.subr.bf16.mxu0 0
      %303 = vmatpush1.bf16.msra.mxu0 0
      %304 = vmatprep.subr.bf16.mxu0 0
      %305 = vmatpush1.bf16.msra.mxu0 0
      %306 = vmatprep.subr.bf16.mxu0 0
      %307 = vmatpush1.bf16.msra.mxu0 0
      %308 = vmatprep.subr.bf16.mxu0 0
      %309 = vmatpush1.bf16.msra.mxu0 0
      %310 = vmatprep.subr.bf16.mxu0 0
      %311 = vmatpush1.bf16.msra.mxu0 0
      %312 = vmatprep.subr.bf16.mxu0 0
      %313 = vmatpush1.bf16.msra.mxu0 0
      %314 = vmatprep.subr.bf16.mxu0 %v275
      %315 = vmatpush1.bf16.msra.mxu0 %v274
      %316 = vmatprep.subr.bf16.mxu0 %v267
      %317 = vmatpush1.bf16.msra.mxu0 %v266
      %318 = vmatprep.subr.bf16.mxu0 0
      %319 = vmatpush2.bf16.msra.mxu0 0
      %320 = vmatprep.subr.bf16.mxu0 0
      %321 = vmatpush2.bf16.msra.mxu0 0
      %322 = vmatprep.subr.bf16.mxu0 0
      %323 = vmatpush2.bf16.msra.mxu0 0
      %324 = vmatprep.subr.bf16.mxu0 0
      %325 = vmatpush2.bf16.msra.mxu0 0
      %326 = vmatprep.subr.bf16.mxu0 0
      %327 = vmatpush2.bf16.msra.mxu0 0
      %328 = vmatprep.subr.bf16.mxu0 0
      %329 = vmatpush2.bf16.msra.mxu0 0
      %330 = vmatprep.subr.bf16.mxu0 0
      %331 = vmatpush2.bf16.msra.mxu0 0
      %332 = vmatprep.subr.bf16.mxu0 0
      %333 = vmatpush2.bf16.msra.mxu0 0
      %334 = vmatprep.mubr.bf16.mxu0 0
      %335 = vmatmul.mubr.bf16.gmra.mxu0 %v300
      %v336 = vpop.f32.mrf.mxu0
      %v337 = vadd.f32 0.0, %v336
      %v338 = vpop.f32.mrf.mxu0
      %v339 = vadd.f32 0.0, %v338
      %v340 = vpop.f32.mrf.mxu0
      %v341 = vpop.f32.mrf.mxu0
      %342 = vdwg.mxu0
      %343 = vmatprep.subr.bf16.mxu0 0
      %344 = vmatpush1.bf16.msra.mxu0 0
      %345 = vmatprep.subr.bf16.mxu0 0
      %346 = vmatpush1.bf16.msra.mxu0 0
      %347 = vmatprep.subr.bf16.mxu0 0
      %348 = vmatpush1.bf16.msra.mxu0 0
      %349 = vmatprep.subr.bf16.mxu0 0
      %350 = vmatpush1.bf16.msra.mxu0 0
      %351 = vmatprep.subr.bf16.mxu0 0
      %352 = vmatpush1.bf16.msra.mxu0 0
      %353 = vmatprep.subr.bf16.mxu0 0
      %354 = vmatpush1.bf16.msra.mxu0 0
      %355 = vmatprep.subr.bf16.mxu0 %v277
      %356 = vmatpush1.bf16.msra.mxu0 %v276
      %357 = vmatprep.subr.bf16.mxu0 %v269
      %358 = vmatpush1.bf16.msra.mxu0 %v268
      %359 = vmatprep.subr.bf16.mxu0 0
      %360 = vmatpush2.bf16.msra.mxu0 0
      %361 = vmatprep.subr.bf16.mxu0 0
      %362 = vmatpush2.bf16.msra.mxu0 0
      %363 = vmatprep.subr.bf16.mxu0 0
      %364 = vmatpush2.bf16.msra.mxu0 0
      %365 = vmatprep.subr.bf16.mxu0 0
      %366 = vmatpush2.bf16.msra.mxu0 0
      %367 = vmatprep.subr.bf16.mxu0 0
      %368 = vmatpush2.bf16.msra.mxu0 0
      %369 = vmatprep.subr.bf16.mxu0 0
      %370 = vmatpush2.bf16.msra.mxu0 0
      %371 = vmatprep.subr.bf16.mxu0 0
      %372 = vmatpush2.bf16.msra.mxu0 0
      %373 = vmatprep.subr.bf16.mxu0 0
      %374 = vmatpush2.bf16.msra.mxu0 0
      %375 = vmatprep.mubr.bf16.mxu0 0
      %376 = vmatmul.mubr.bf16.gmra.mxu0 %v300
      %v377 = vpop.f32.mrf.mxu0
      %v378 = vadd.f32 0.0, %v377
      %v379 = vpop.f32.mrf.mxu0
      %v380 = vadd.f32 0.0, %v379
      %v381 = vpop.f32.mrf.mxu0
      %v382 = vpop.f32.mrf.mxu0
      %383 = vdwg.mxu0
      %384 = vmatprep.subr.bf16.mxu0 0
      %385 = vmatpush1.bf16.msra.mxu0 0
      %386 = vmatprep.subr.bf16.mxu0 0
      %387 = vmatpush1.bf16.msra.mxu0 0
      %388 = vmatprep.subr.bf16.mxu0 0
      %389 = vmatpush1.bf16.msra.mxu0 0
      %390 = vmatprep.subr.bf16.mxu0 0
      %391 = vmatpush1.bf16.msra.mxu0 0
      %392 = vmatprep.subr.bf16.mxu0 0
      %393 = vmatpush1.bf16.msra.mxu0 0
      %394 = vmatprep.subr.bf16.mxu0 0
      %395 = vmatpush1.bf16.msra.mxu0 0
      %396 = vmatprep.subr.bf16.mxu0 %v279
      %397 = vmatpush1.bf16.msra.mxu0 %v278
      %398 = vmatprep.subr.bf16.mxu0 %v271
      %399 = vmatpush1.bf16.msra.mxu0 %v270
      %400 = vmatprep.subr.bf16.mxu0 0
      %401 = vmatpush2.bf16.msra.mxu0 0
      %402 = vmatprep.subr.bf16.mxu0 0
      %403 = vmatpush2.bf16.msra.mxu0 0
      %404 = vmatprep.subr.bf16.mxu0 0
      %405 = vmatpush2.bf16.msra.mxu0 0
      %406 = vmatprep.subr.bf16.mxu0 0
      %407 = vmatpush2.bf16.msra.mxu0 0
      %408 = vmatprep.subr.bf16.mxu0 0
      %409 = vmatpush2.bf16.msra.mxu0 0
      %410 = vmatprep.subr.bf16.mxu0 0
      %411 = vmatpush2.bf16.msra.mxu0 0
      %412 = vmatprep.subr.bf16.mxu0 0
      %413 = vmatpush2.bf16.msra.mxu0 0
      %414 = vmatprep.subr.bf16.mxu0 0
      %415 = vmatpush2.bf16.msra.mxu0 0
      %416 = vmatprep.mubr.bf16.mxu0 0
      %417 = vmatmul.mubr.bf16.gmra.mxu0 %v300
      %v418 = vpop.f32.mrf.mxu0
      %v419 = vadd.f32 0.0, %v418
      %v420 = vpop.f32.mrf.mxu0
      %v421 = vadd.f32 0.0, %v420
      %v422 = vpop.f32.mrf.mxu0
      %v423 = vpop.f32.mrf.mxu0
      %424 = vdwg.mxu0
      %425 = vmatprep.subr.bf16.mxu0 0
      %426 = vmatpush1.bf16.msra.mxu0 0
      %427 = vmatprep.subr.bf16.mxu0 0
      %428 = vmatpush1.bf16.msra.mxu0 0
      %429 = vmatprep.subr.bf16.mxu0 0
      %430 = vmatpush1.bf16.msra.mxu0 0
      %431 = vmatprep.subr.bf16.mxu0 0
      %432 = vmatpush1.bf16.msra.mxu0 0
      %433 = vmatprep.subr.bf16.mxu0 0
      %434 = vmatpush1.bf16.msra.mxu0 0
      %435 = vmatprep.subr.bf16.mxu0 0
      %436 = vmatpush1.bf16.msra.mxu0 0
      %437 = vmatprep.subr.bf16.mxu0 %v281
      %438 = vmatpush1.bf16.msra.mxu0 %v280
      %439 = vmatprep.subr.bf16.mxu0 %v273
      %440 = vmatpush1.bf16.msra.mxu0 %v272
      %441 = vmatprep.subr.bf16.mxu0 0
      %442 = vmatpush2.bf16.msra.mxu0 0
      %443 = vmatprep.subr.bf16.mxu0 0
      %444 = vmatpush2.bf16.msra.mxu0 0
      %445 = vmatprep.subr.bf16.mxu0 0
      %446 = vmatpush2.bf16.msra.mxu0 0
      %447 = vmatprep.subr.bf16.mxu0 0
      %448 = vmatpush2.bf16.msra.mxu0 0
      %449 = vmatprep.subr.bf16.mxu0 0
      %450 = vmatpush2.bf16.msra.mxu0 0
      %451 = vmatprep.subr.bf16.mxu0 0
      %452 = vmatpush2.bf16.msra.mxu0 0
      %453 = vmatprep.subr.bf16.mxu0 0
      %454 = vmatpush2.bf16.msra.mxu0 0
      %455 = vmatprep.subr.bf16.mxu0 0
      %456 = vmatpush2.bf16.msra.mxu0 0
      %457 = vmatprep.mubr.bf16.mxu0 0
      %458 = vmatmul.mubr.bf16.gmra.mxu0 %v300
      %v459 = vpop.f32.mrf.mxu0
      %v460 = vadd.f32 0.0, %v459
      %v461 = vpop.f32.mrf.mxu0
      %v462 = vadd.f32 0.0, %v461
      %v463 = vpop.f32.mrf.mxu0
      %v464 = vpop.f32.mrf.mxu0
      %465 = vdwg.mxu0
      %v466 = vsub.f32 0.0, %v337
      %v467 = vsub.f32 0.0, %v339
      %v468 = vsub.f32 0.0, %v378
      %v469 = vsub.f32 0.0, %v380
      %v470 = vsub.f32 0.0, %v419
      %v471 = vsub.f32 0.0, %v421
      %v472 = vsub.f32 0.0, %v460
      %v473 = vsub.f32 0.0, %v462
      %v474 = vmul.f32 %v466, 1.442695
      %v475 = vpow.pop %v474
      %v476 = vmul.f32 %v467, 1.442695
      %v477 = vpow.pop %v476
      %v478 = vmul.f32 %v468, 1.442695
      %v479 = vpow.pop %v478
      %v480 = vmul.f32 %v469, 1.442695
      %v481 = vpow.pop %v480
      %v482 = vmul.f32 %v470, 1.442695
      %v483 = vpow.pop %v482
      %v484 = vmul.f32 %v471, 1.442695
      %v485 = vpow.pop %v484
      %v486 = vmul.f32 %v472, 1.442695
      %v487 = vpow.pop %v486
      %v488 = vmul.f32 %v473, 1.442695
      %v489 = vpow.pop %v488
      %v490 = vadd.f32 %v475, 1.0
      %v491 = vadd.f32 %v477, 1.0
      %v492 = vadd.f32 %v479, 1.0
      %v493 = vadd.f32 %v481, 1.0
      %v494 = vadd.f32 %v483, 1.0
      %v495 = vadd.f32 %v485, 1.0
      %v496 = vadd.f32 %v487, 1.0
      %v497 = vadd.f32 %v489, 1.0
      %v498 = vrcp.pop %v490
      %v499 = vmul.f32 1.0, %v498
      %v500 = vrcp.pop %v491
      %v501 = vmul.f32 1.0, %v500
      %v502 = vrcp.pop %v492
      %v503 = vmul.f32 1.0, %v502
      %v504 = vrcp.pop %v493
      %v505 = vmul.f32 1.0, %v504
      %v506 = vrcp.pop %v494
      %v507 = vmul.f32 1.0, %v506
      %v508 = vrcp.pop %v495
      %v509 = vmul.f32 1.0, %v508
      %v510 = vrcp.pop %v496
      %v511 = vmul.f32 1.0, %v510
      %v512 = vrcp.pop %v497
      %v513 = vmul.f32 1.0, %v512
      %514 = vst [vmem:[%s198] sm:$0xff] %v499
      %515 = vst [vmem:[%s198 + $0x8] sm:$0xff] %v501
      %516 = vst [vmem:[%s198 + $0x10] sm:$0xff] %v503
      %517 = vst [vmem:[%s198 + $0x18] sm:$0xff] %v505
      %518 = vst [vmem:[%s198 + $0x20] sm:$0xff] %v507
      %519 = vst [vmem:[%s198 + $0x28] sm:$0xff] %v509
      %520 = vst [vmem:[%s198 + $0x30] sm:$0xff] %v511
      %521 = vst [vmem:[%s198 + $0x38] sm:$0xff] %v513
      %s522 = smul.u32 8, %s18
      %p523 = scmp.lt.s32.totalorder %s17, 7
      %s524 = scalar_select %p523, %s17, 7
      %p525 = scmp.lt.s32.totalorder %s522, 7
      %s526 = scalar_select %p525, %s522, 7
      %s527 = smul.addr %s524, 8
      %s528 = sadd.s32 %s526, %s527
      %s529 = smul.addr %s528, 8
      %s530 = scalar_lea.vmem %s2, %s529
      // Predicated region
      $region29: #{_forward.13} parent=27 // pred_check
        %p531 = pneg %p99
      $region30: #{_forward.13} parent=27 // pred_check_branch
        %533 = sbr.rel (%p531) target = $region32
      $region31: #{_forward.13} parent=27 // pred_region
        %s534 = smul.u32 8, %s18
      $region32: #{_forward.13} parent=27 // pred_fallthru
        _
    $region28: #{_forward.13} parent=5 // pred_fallthru
      _
    %p535 = scmp.le.s32.totalorder 2, %s8
    // Predicated region
    $region33: #{_forward.13} parent=5 // pred_check
      %p536 = pneg %p535
    $region34: #{_forward.13} parent=5 // pred_check_branch
      %538 = sbr.rel (%p536) target = $region36
    $region35: #{_forward.13} parent=5 // pred_region
      %s539 = ssub.s32 %s8, 2
      // Predicated region
      $region37: #{_forward.13} parent=35 // pred_check
        %p540 = pneg %p105
      $region38: #{_forward.13} parent=35 // pred_check_branch
        %542 = sbr.rel (%p540) target = $region40
      $region39: #{_forward.13} parent=35 // pred_region
        %s543 = smul.u32 8, %s20
        %p544 = scmp.lt.s32.totalorder %s19, 7
        %s545 = scalar_select %p544, %s19, 7
        %p546 = scmp.lt.s32.totalorder %s543, 7
        %s547 = scalar_select %p546, %s543, 7
        %s548 = smul.addr %s545, 8
        %s549 = sadd.s32 %s547, %s548
        %s550 = smul.addr %s549, 8
        %s551 = scalar_lea.vmem %s2, %s550
      $region40: #{_forward.13} parent=35 // pred_fallthru
        _
    $region36: #{_forward.13} parent=5 // pred_fallthru
      _
  $region6: #{_forward.13} parent=0 // loop_footer
    %s12 = sadd.s32 1, %s8
  $region7: #{_forward.13} parent=0 // loop_footer_branch
    %7 = sbr.rel target = $region3
  $region8: #{_forward.13} parent=0 // loop_exit
    _

</llo_original>
